<compile_context>
chip_gen: v7x
topology: tpu7x:2x2x1
jax: 0.10.0
libtpu: 0.0.40
codegen_flags: <defaults>
</compile_context>

<pallas_src>
import jax
import jax.numpy as jnp
import numpy as np
from jax.experimental import pallas as pl
from jax.experimental.pallas import tpu as pltpu

EPS = 1e-5


# ----------------------------- kernel -------------------------------------- #

def _make_basic_block_kernel(n_stat: float):
    """n_stat = N*H*W, the per-channel BatchNorm sample count."""

    def kernel(xrows_ref, w1_ref, w2_ref, g1_ref, b1_ref, g2_ref, b2_ref,
               s_ref, out_ref, pad2_ref):
        N, Hp, _ = xrows_ref.shape
        H = Hp - 2
        M, L = out_ref.shape                      # M = N*H, L = W*C (lane-dense)
        inv_n = 1.0 / n_stat

        def conv3x3(src_ref, w_ref):
            # src_ref: (N, H+2, W*Cin) row-padded, lane-dense rows.
            # w_ref:   (3, W*Cin, W*Cout) banded weights (dx taps + width padding
            #          folded in on the host).
            acc = jnp.zeros((M, L), jnp.float32)
            for dy in range(3):                   # unrolled: 3 MXU matmuls
                a = src_ref[:, dy:dy + H, :].reshape(M, src_ref.shape[-1])
                acc = acc + jnp.dot(a, w_ref[dy],
                                    preferred_element_type=jnp.float32)
            return acc

        def batchnorm(y, g_ref, b_ref):
            # Training-mode BN, single pass (sum & sum-of-squares).  Per-channel
            # reduce + lane re-broadcast via one matmul with the aggregation
            # matrix s_ref (s[i,j] = 1 iff i%C == j%C).
            s = s_ref[...]
            col_sum = jnp.sum(y, axis=0, keepdims=True)        # (1, L)
            col_sq = jnp.sum(y * y, axis=0, keepdims=True)     # (1, L)
            tot = jnp.dot(col_sum, s, preferred_element_type=jnp.float32)
            tot_sq = jnp.dot(col_sq, s, preferred_element_type=jnp.float32)
            mean = tot * inv_n
            var = tot_sq * inv_n - mean * mean
            scale = g_ref[...] * jax.lax.rsqrt(var + EPS)       # (1, L)
            shift = b_ref[...] - mean * scale                   # (1, L)
            return y * scale + shift

        # ---- conv1 -> bn1 -> relu ----
        y1 = jnp.maximum(
            batchnorm(conv3x3(xrows_ref, w1_ref), g1_ref, b1_ref), 0.0)

        # ---- zero-pad intermediate entirely in VMEM (rows only; width padding
        #      is folded into the banded weights) ----
        pad2_ref[...] = jnp.zeros(pad2_ref.shape, jnp.float32)
        pad2_ref[:, 1:1 + H, :] = y1.reshape(N, H, L)

        # ---- conv2 -> bn2 -> +identity -> relu ----
        y2 = batchnorm(conv3x3(pad2_ref, w2_ref), g2_ref, b2_ref)
        res = xrows_ref[:, 1:1 + H, :].reshape(M, L)   # identity shortcut
        out_ref[...] = jnp.maximum(y2 + res, 0.0)

    return kernel


# ----------------------------- host-side packing ---------------------------- #

def _pack_band_weight(w_oihw, W):
    """(Cout, Cin, 3, 3) OIHW -> (3, W*Cin, W*Cout) banded matrices.

    band[dy, xin*Cin + ci, x*Cout + co] = w[co, ci, dy, x - xin + 1]
    (blocks with x - xin + 1 outside [0,3) are zero => SAME width padding).
    """
    w = np.asarray(w_oihw, dtype=np.float32)
    Cout, Cin, KH, KW = w.shape
    band = np.zeros((KH, W * Cin, W * Cout), np.float32)
    for dy in range(KH):
        for dx in range(KW):
            for x in range(W):
                xin = x + dx - 1
                if 0 <= xin < W:
                    band[dy,
                         xin * Cin:(xin + 1) * Cin,
                         x * Cout:(x + 1) * Cout] = w[:, :, dy, dx].T
    return jnp.asarray(band)


def _channel_agg_matrix(W, C):
    lane_c = np.arange(W * C) % C
    return jnp.asarray((lane_c[:, None] == lane_c[None, :]).astype(np.float32))


# ----------------------------- wrapper -------------------------------------- #

def basic_block_forward(x_nchw, w1, g1, b1, w2, g2, b2):
    """BasicBlock forward (stride=1, identity shortcut). x_nchw: (N,C,H,W) f32."""
    x_nchw = x_nchw.astype(jnp.float32)
    N, Cin, H, W = x_nchw.shape
    Cout = int(w1.shape[0])
    assert Cin == Cout and int(w2.shape[0]) == Cout and int(w2.shape[1]) == Cout, (
        "only the stride=1 identity-shortcut path is implemented")
    L = W * Cout
    Hp = H + 2

    # NCHW -> lane-dense rows (N, H, W*C), then row-only zero padding.
    x_rows = jnp.transpose(x_nchw, (0, 2, 3, 1)).reshape(N, H, W * Cin)
    x_rows_pad = jnp.pad(x_rows, ((0, 0), (1, 1), (0, 0)))

    w1b = _pack_band_weight(w1, W)          # (3, W*Cin,  W*Cout)
    w2b = _pack_band_weight(w2, W)          # (3, W*Cout, W*Cout)
    s_mat = _channel_agg_matrix(W, Cout)    # (L, L)

    def tile_lane(v):
        return jnp.tile(jnp.asarray(v, jnp.float32).reshape(1, Cout), (1, W))

    g1l, b1l = tile_lane(g1), tile_lane(b1)
    g2l, b2l = tile_lane(g2), tile_lane(b2)

    vmem = pl.BlockSpec(memory_space=pltpu.MemorySpace.VMEM)
    out2d = pl.pallas_call(
        _make_basic_block_kernel(float(N * H * W)),
        out_shape=jax.ShapeDtypeStruct((N * H, L), jnp.float32),
        in_specs=[vmem] * 8,
        out_specs=vmem,
        scratch_shapes=[pltpu.VMEM((N, Hp, L), jnp.float32)],
    )(x_rows_pad, w1b, w2b, g1l, b1l, g2l, b2l, s_mat)

    # (N*H, W*C) -> NCHW
    return jnp.transpose(out2d.reshape(N, H, W, Cout), (0, 3, 1, 2))


# ----------------------------- reference ------------------------------------ #

def ref_forward(x, w1, g1, b1, w2, g2, b2):
    def conv(x, w):
        return jax.lax.conv_general_dilated(
            x, w, window_strides=(1, 1), padding="SAME",
            dimension_numbers=("NCHW", "OIHW", "NCHW"))

    def bn(x, g, b):
        mean = jnp.mean(x, axis=(0, 2, 3), keepdims=True)
        var = jnp.mean((x - mean) ** 2, axis=(0, 2, 3), keepdims=True)
        return ((x - mean) / jnp.sqrt(var + EPS)
                * g.reshape(1, -1, 1, 1) + b.reshape(1, -1, 1, 1))

    out = jax.nn.relu(bn(conv(x, w1), g1, b1))
    out = bn(conv(out, w2), g2, b2)
    return jax.nn.relu(out + x)


# ------------------------------- main ---------------------------------------- #

if __name__ == "__main__":
    N, C, H, W = 2, 8, 16, 16  # in_planes == planes == 8, stride == 1
    key = jax.random.PRNGKey(0)
    kx, kw1, kw2, kg1, kb1, kg2, kb2 = jax.random.split(key, 7)

    x = jax.random.normal(kx, (N, C, H, W), jnp.float32)
    w1 = 0.1 * jax.random.normal(kw1, (C, C, 3, 3), jnp.float32)
    w2 = 0.1 * jax.random.normal(kw2, (C, C, 3, 3), jnp.float32)
    g1 = 1.0 + 0.1 * jax.random.normal(kg1, (C,), jnp.float32)
    b1 = 0.1 * jax.random.normal(kb1, (C,), jnp.float32)
    g2 = 1.0 + 0.1 * jax.random.normal(kg2, (C,), jnp.float32)
    b2 = 0.1 * jax.random.normal(kb2, (C,), jnp.float32)

    out = jax.block_until_ready(
        basic_block_forward(x, w1, g1, b1, w2, g2, b2))
    ref = jax.block_until_ready(ref_forward(x, w1, g1, b1, w2, g2, b2))

    assert out.shape == (N, C, H, W), out.shape
    np.testing.assert_allclose(np.asarray(out), np.asarray(ref),
                               rtol=1e-3, atol=1e-3)
    print("KERNEL_OK")
</pallas_src>

<mosaic_0001>
module attributes {stable_mosaic.version = 11 : i64} {
  func.func @kernel(%arg0: memref<2x18x128xf32, #tpu.memory_space<vmem>>, %arg1: memref<3x128x128xf32, #tpu.memory_space<vmem>>, %arg2: memref<3x128x128xf32, #tpu.memory_space<vmem>>, %arg3: memref<1x128xf32, #tpu.memory_space<vmem>>, %arg4: memref<1x128xf32, #tpu.memory_space<vmem>>, %arg5: memref<1x128xf32, #tpu.memory_space<vmem>>, %arg6: memref<1x128xf32, #tpu.memory_space<vmem>>, %arg7: memref<128x128xf32, #tpu.memory_space<vmem>>, %arg8: memref<32x128xf32, #tpu.memory_space<vmem>>, %arg9: memref<2x18x128xf32, #tpu.memory_space<vmem>>) attributes {dimension_semantics = [], scalar_prefetch = 0 : i64, scratch_operands = 1 : i64, tpu.core_type = #tpu.core_type<tc>} {
    %cst = arith.constant 0.000000e+00 : f32
    %0 = vector.broadcast %cst : f32 to vector<32x128xf32>
    %c0 = arith.constant 0 : index
    %c0_0 = arith.constant 0 : index
    %c0_1 = arith.constant 0 : index
    %1 = vector.load %arg0[%c0, %c0_0, %c0_1] : memref<2x18x128xf32, #tpu.memory_space<vmem>>, vector<2x16x128xf32>
    %2 = vector.shape_cast %1 : vector<2x16x128xf32> to vector<32x128xf32>
    %c0_2 = arith.constant 0 : index
    %c0_3 = arith.constant 0 : index
    %c0_4 = arith.constant 0 : index
    %3 = vector.load %arg1[%c0_2, %c0_3, %c0_4] : memref<3x128x128xf32, #tpu.memory_space<vmem>>, vector<1x128x128xf32>
    %4 = vector.shape_cast %3 : vector<1x128x128xf32> to vector<128x128xf32>
    %cst_5 = arith.constant dense<0.000000e+00> : vector<32x128xf32>
    %5 = tpu.matmul %2, %4, %cst_5 {dimension_numbers = #tpu.dot_dimension_numbers<[1], [0], [0], [1], [0, 0, 1, 1], [], []>} : vector<32x128xf32>, vector<128x128xf32>, vector<32x128xf32> -> vector<32x128xf32>
    %6 = arith.addf %0, %5 : vector<32x128xf32>
    %c0_6 = arith.constant 0 : index
    %c1 = arith.constant 1 : index
    %c0_7 = arith.constant 0 : index
    %7 = vector.load %arg0[%c0_6, %c1, %c0_7] : memref<2x18x128xf32, #tpu.memory_space<vmem>>, vector<2x16x128xf32>
    %8 = vector.shape_cast %7 : vector<2x16x128xf32> to vector<32x128xf32>
    %c1_8 = arith.constant 1 : index
    %c0_9 = arith.constant 0 : index
    %c0_10 = arith.constant 0 : index
    %9 = vector.load %arg1[%c1_8, %c0_9, %c0_10] : memref<3x128x128xf32, #tpu.memory_space<vmem>>, vector<1x128x128xf32>
    %10 = vector.shape_cast %9 : vector<1x128x128xf32> to vector<128x128xf32>
    %cst_11 = arith.constant dense<0.000000e+00> : vector<32x128xf32>
    %11 = tpu.matmul %8, %10, %cst_11 {dimension_numbers = #tpu.dot_dimension_numbers<[1], [0], [0], [1], [0, 0, 1, 1], [], []>} : vector<32x128xf32>, vector<128x128xf32>, vector<32x128xf32> -> vector<32x128xf32>
    %12 = arith.addf %6, %11 : vector<32x128xf32>
    %c0_12 = arith.constant 0 : index
    %c2 = arith.constant 2 : index
    %c0_13 = arith.constant 0 : index
    %13 = vector.load %arg0[%c0_12, %c2, %c0_13] : memref<2x18x128xf32, #tpu.memory_space<vmem>>, vector<2x16x128xf32>
    %14 = vector.shape_cast %13 : vector<2x16x128xf32> to vector<32x128xf32>
    %c2_14 = arith.constant 2 : index
    %c0_15 = arith.constant 0 : index
    %c0_16 = arith.constant 0 : index
    %15 = vector.load %arg1[%c2_14, %c0_15, %c0_16] : memref<3x128x128xf32, #tpu.memory_space<vmem>>, vector<1x128x128xf32>
    %16 = vector.shape_cast %15 : vector<1x128x128xf32> to vector<128x128xf32>
    %cst_17 = arith.constant dense<0.000000e+00> : vector<32x128xf32>
    %17 = tpu.matmul %14, %16, %cst_17 {dimension_numbers = #tpu.dot_dimension_numbers<[1], [0], [0], [1], [0, 0, 1, 1], [], []>} : vector<32x128xf32>, vector<128x128xf32>, vector<32x128xf32> -> vector<32x128xf32>
    %18 = arith.addf %12, %17 : vector<32x128xf32>
    %c0_18 = arith.constant 0 : index
    %c0_19 = arith.constant 0 : index
    %19 = vector.load %arg7[%c0_18, %c0_19] : memref<128x128xf32, #tpu.memory_space<vmem>>, vector<128x128xf32>
    %cst_20 = arith.constant dense<0.000000e+00> : vector<128xf32>
    %20 = vector.multi_reduction <add>, %18, %cst_20 [0] : vector<32x128xf32> to vector<128xf32>
    %21 = vector.shape_cast %20 : vector<128xf32> to vector<1x128xf32>
    %22 = arith.mulf %18, %18 : vector<32x128xf32>
    %cst_21 = arith.constant dense<0.000000e+00> : vector<128xf32>
    %23 = vector.multi_reduction <add>, %22, %cst_21 [0] : vector<32x128xf32> to vector<128xf32>
    %24 = vector.shape_cast %23 : vector<128xf32> to vector<1x128xf32>
    %cst_22 = arith.constant dense<0.000000e+00> : vector<1x128xf32>
    %25 = tpu.matmul %21, %19, %cst_22 {dimension_numbers = #tpu.dot_dimension_numbers<[1], [0], [0], [1], [0, 0, 1, 1], [], []>} : vector<1x128xf32>, vector<128x128xf32>, vector<1x128xf32> -> vector<1x128xf32>
    %cst_23 = arith.constant dense<0.000000e+00> : vector<1x128xf32>
    %26 = tpu.matmul %24, %19, %cst_23 {dimension_numbers = #tpu.dot_dimension_numbers<[1], [0], [0], [1], [0, 0, 1, 1], [], []>} : vector<1x128xf32>, vector<128x128xf32>, vector<1x128xf32> -> vector<1x128xf32>
    %cst_24 = arith.constant 0.001953125 : f32
    %27 = vector.broadcast %cst_24 : f32 to vector<1x128xf32>
    %28 = arith.mulf %25, %27 : vector<1x128xf32>
    %cst_25 = arith.constant 0.001953125 : f32
    %29 = vector.broadcast %cst_25 : f32 to vector<1x128xf32>
    %30 = arith.mulf %26, %29 : vector<1x128xf32>
    %31 = arith.mulf %28, %28 : vector<1x128xf32>
    %32 = arith.subf %30, %31 : vector<1x128xf32>
    %c0_26 = arith.constant 0 : index
    %c0_27 = arith.constant 0 : index
    %33 = vector.load %arg3[%c0_26, %c0_27] : memref<1x128xf32, #tpu.memory_space<vmem>>, vector<1x128xf32>
    %cst_28 = arith.constant 9.99999974E-6 : f32
    %34 = vector.broadcast %cst_28 : f32 to vector<1x128xf32>
    %35 = arith.addf %32, %34 : vector<1x128xf32>
    %36 = math.rsqrt %35 : vector<1x128xf32>
    %37 = arith.mulf %33, %36 : vector<1x128xf32>
    %c0_29 = arith.constant 0 : index
    %c0_30 = arith.constant 0 : index
    %38 = vector.load %arg4[%c0_29, %c0_30] : memref<1x128xf32, #tpu.memory_space<vmem>>, vector<1x128xf32>
    %39 = arith.mulf %28, %37 : vector<1x128xf32>
    %40 = arith.subf %38, %39 : vector<1x128xf32>
    %41 = vector.broadcast %37 : vector<1x128xf32> to vector<32x128xf32>
    %42 = arith.mulf %18, %41 : vector<32x128xf32>
    %43 = vector.broadcast %40 : vector<1x128xf32> to vector<32x128xf32>
    %44 = arith.addf %42, %43 : vector<32x128xf32>
    %cst_31 = arith.constant 0.000000e+00 : f32
    %45 = vector.broadcast %cst_31 : f32 to vector<32x128xf32>
    %46 = arith.maximumf %44, %45 : vector<32x128xf32>
    %cst_32 = arith.constant 0.000000e+00 : f32
    %47 = vector.broadcast %cst_32 : f32 to vector<2x18x128xf32>
    %c0_33 = arith.constant 0 : index
    %c0_34 = arith.constant 0 : index
    %c0_35 = arith.constant 0 : index
    %48 = vector.load %arg9[%c0_33, %c0_34, %c0_35] : memref<2x18x128xf32, #tpu.memory_space<vmem>>, vector<2x18x128xf32>
    tpu.vector_store %arg9[%c0_33, %c0_34, %c0_35], %47 {strides = array<i32>} : memref<2x18x128xf32, #tpu.memory_space<vmem>>, vector<2x18x128xf32>,
    %49 = vector.shape_cast %46 : vector<32x128xf32> to vector<2x16x128xf32>
    %c0_36 = arith.constant 0 : index
    %c1_37 = arith.constant 1 : index
    %c0_38 = arith.constant 0 : index
    %50 = vector.load %arg9[%c0_36, %c1_37, %c0_38] : memref<2x18x128xf32, #tpu.memory_space<vmem>>, vector<2x16x128xf32>
    tpu.vector_store %arg9[%c0_36, %c1_37, %c0_38], %49 {strides = array<i32>} : memref<2x18x128xf32, #tpu.memory_space<vmem>>, vector<2x16x128xf32>,
    %cst_39 = arith.constant 0.000000e+00 : f32
    %51 = vector.broadcast %cst_39 : f32 to vector<32x128xf32>
    %c0_40 = arith.constant 0 : index
    %c0_41 = arith.constant 0 : index
    %c0_42 = arith.constant 0 : index
    %52 = vector.load %arg9[%c0_40, %c0_41, %c0_42] : memref<2x18x128xf32, #tpu.memory_space<vmem>>, vector<2x16x128xf32>
    %53 = vector.shape_cast %52 : vector<2x16x128xf32> to vector<32x128xf32>
    %c0_43 = arith.constant 0 : index
    %c0_44 = arith.constant 0 : index
    %c0_45 = arith.constant 0 : index
    %54 = vector.load %arg2[%c0_43, %c0_44, %c0_45] : memref<3x128x128xf32, #tpu.memory_space<vmem>>, vector<1x128x128xf32>
    %55 = vector.shape_cast %54 : vector<1x128x128xf32> to vector<128x128xf32>
    %cst_46 = arith.constant dense<0.000000e+00> : vector<32x128xf32>
    %56 = tpu.matmul %53, %55, %cst_46 {dimension_numbers = #tpu.dot_dimension_numbers<[1], [0], [0], [1], [0, 0, 1, 1], [], []>} : vector<32x128xf32>, vector<128x128xf32>, vector<32x128xf32> -> vector<32x128xf32>
    %57 = arith.addf %51, %56 : vector<32x128xf32>
    %c0_47 = arith.constant 0 : index
    %c1_48 = arith.constant 1 : index
    %c0_49 = arith.constant 0 : index
    %58 = vector.load %arg9[%c0_47, %c1_48, %c0_49] : memref<2x18x128xf32, #tpu.memory_space<vmem>>, vector<2x16x128xf32>
    %59 = vector.shape_cast %58 : vector<2x16x128xf32> to vector<32x128xf32>
    %c1_50 = arith.constant 1 : index
    %c0_51 = arith.constant 0 : index
    %c0_52 = arith.constant 0 : index
    %60 = vector.load %arg2[%c1_50, %c0_51, %c0_52] : memref<3x128x128xf32, #tpu.memory_space<vmem>>, vector<1x128x128xf32>
    %61 = vector.shape_cast %60 : vector<1x128x128xf32> to vector<128x128xf32>
    %cst_53 = arith.constant dense<0.000000e+00> : vector<32x128xf32>
    %62 = tpu.matmul %59, %61, %cst_53 {dimension_numbers = #tpu.dot_dimension_numbers<[1], [0], [0], [1], [0, 0, 1, 1], [], []>} : vector<32x128xf32>, vector<128x128xf32>, vector<32x128xf32> -> vector<32x128xf32>
    %63 = arith.addf %57, %62 : vector<32x128xf32>
    %c0_54 = arith.constant 0 : index
    %c2_55 = arith.constant 2 : index
    %c0_56 = arith.constant 0 : index
    %64 = vector.load %arg9[%c0_54, %c2_55, %c0_56] : memref<2x18x128xf32, #tpu.memory_space<vmem>>, vector<2x16x128xf32>
    %65 = vector.shape_cast %64 : vector<2x16x128xf32> to vector<32x128xf32>
    %c2_57 = arith.constant 2 : index
    %c0_58 = arith.constant 0 : index
    %c0_59 = arith.constant 0 : index
    %66 = vector.load %arg2[%c2_57, %c0_58, %c0_59] : memref<3x128x128xf32, #tpu.memory_space<vmem>>, vector<1x128x128xf32>
    %67 = vector.shape_cast %66 : vector<1x128x128xf32> to vector<128x128xf32>
    %cst_60 = arith.constant dense<0.000000e+00> : vector<32x128xf32>
    %68 = tpu.matmul %65, %67, %cst_60 {dimension_numbers = #tpu.dot_dimension_numbers<[1], [0], [0], [1], [0, 0, 1, 1], [], []>} : vector<32x128xf32>, vector<128x128xf32>, vector<32x128xf32> -> vector<32x128xf32>
    %69 = arith.addf %63, %68 : vector<32x128xf32>
    %c0_61 = arith.constant 0 : index
    %c0_62 = arith.constant 0 : index
    %70 = vector.load %arg7[%c0_61, %c0_62] : memref<128x128xf32, #tpu.memory_space<vmem>>, vector<128x128xf32>
    %cst_63 = arith.constant dense<0.000000e+00> : vector<128xf32>
    %71 = vector.multi_reduction <add>, %69, %cst_63 [0] : vector<32x128xf32> to vector<128xf32>
    %72 = vector.shape_cast %71 : vector<128xf32> to vector<1x128xf32>
    %73 = arith.mulf %69, %69 : vector<32x128xf32>
    %cst_64 = arith.constant dense<0.000000e+00> : vector<128xf32>
    %74 = vector.multi_reduction <add>, %73, %cst_64 [0] : vector<32x128xf32> to vector<128xf32>
    %75 = vector.shape_cast %74 : vector<128xf32> to vector<1x128xf32>
    %cst_65 = arith.constant dense<0.000000e+00> : vector<1x128xf32>
    %76 = tpu.matmul %72, %70, %cst_65 {dimension_numbers = #tpu.dot_dimension_numbers<[1], [0], [0], [1], [0, 0, 1, 1], [], []>} : vector<1x128xf32>, vector<128x128xf32>, vector<1x128xf32> -> vector<1x128xf32>
    %cst_66 = arith.constant dense<0.000000e+00> : vector<1x128xf32>
    %77 = tpu.matmul %75, %70, %cst_66 {dimension_numbers = #tpu.dot_dimension_numbers<[1], [0], [0], [1], [0, 0, 1, 1], [], []>} : vector<1x128xf32>, vector<128x128xf32>, vector<1x128xf32> -> vector<1x128xf32>
    %cst_67 = arith.constant 0.001953125 : f32
    %78 = vector.broadcast %cst_67 : f32 to vector<1x128xf32>
    %79 = arith.mulf %76, %78 : vector<1x128xf32>
    %cst_68 = arith.constant 0.001953125 : f32
    %80 = vector.broadcast %cst_68 : f32 to vector<1x128xf32>
    %81 = arith.mulf %77, %80 : vector<1x128xf32>
    %82 = arith.mulf %79, %79 : vector<1x128xf32>
    %83 = arith.subf %81, %82 : vector<1x128xf32>
    %c0_69 = arith.constant 0 : index
    %c0_70 = arith.constant 0 : index
    %84 = vector.load %arg5[%c0_69, %c0_70] : memref<1x128xf32, #tpu.memory_space<vmem>>, vector<1x128xf32>
    %cst_71 = arith.constant 9.99999974E-6 : f32
    %85 = vector.broadcast %cst_71 : f32 to vector<1x128xf32>
    %86 = arith.addf %83, %85 : vector<1x128xf32>
    %87 = math.rsqrt %86 : vector<1x128xf32>
    %88 = arith.mulf %84, %87 : vector<1x128xf32>
    %c0_72 = arith.constant 0 : index
    %c0_73 = arith.constant 0 : index
    %89 = vector.load %arg6[%c0_72, %c0_73] : memref<1x128xf32, #tpu.memory_space<vmem>>, vector<1x128xf32>
    %90 = arith.mulf %79, %88 : vector<1x128xf32>
    %91 = arith.subf %89, %90 : vector<1x128xf32>
    %92 = vector.broadcast %88 : vector<1x128xf32> to vector<32x128xf32>
    %93 = arith.mulf %69, %92 : vector<32x128xf32>
    %94 = vector.broadcast %91 : vector<1x128xf32> to vector<32x128xf32>
    %95 = arith.addf %93, %94 : vector<32x128xf32>
    %c0_74 = arith.constant 0 : index
    %c1_75 = arith.constant 1 : index
    %c0_76 = arith.constant 0 : index
    %96 = vector.load %arg0[%c0_74, %c1_75, %c0_76] : memref<2x18x128xf32, #tpu.memory_space<vmem>>, vector<2x16x128xf32>
    %97 = vector.shape_cast %96 : vector<2x16x128xf32> to vector<32x128xf32>
    %98 = arith.addf %95, %97 : vector<32x128xf32>
    %cst_77 = arith.constant 0.000000e+00 : f32
    %99 = vector.broadcast %cst_77 : f32 to vector<32x128xf32>
    %100 = arith.maximumf %98, %99 : vector<32x128xf32>
    %c0_78 = arith.constant 0 : index
    %c0_79 = arith.constant 0 : index
    %101 = vector.load %arg8[%c0_78, %c0_79] : memref<32x128xf32, #tpu.memory_space<vmem>>, vector<32x128xf32>
    tpu.vector_store %arg8[%c0_78, %c0_79], %100 {strides = array<i32>} : memref<32x128xf32, #tpu.memory_space<vmem>>, vector<32x128xf32>,
    return
  }
}

</mosaic_0001>

<llo_original>
// kernel: tpu_custom_call.1
$region0: #{tpu_custom_call.1}
  #allocation0 [shape = 'u32[]', space=smem, size = 0x4, offset = 0x4, fixed_abs, tag = 'smem constant byte address 0x4 - core index']
  #allocation1 [shape = 'u32[144,128]{1,0:T(1,128)}', space=vmem, size = 0x12000, scoped, tag = 'internal scratch']
  #allocation2 [shape = 'f32[2,18,128]{2,1,0:T(8,128)}', space=vmem, size = 0x6000, scoped, tag = 'scratch operand']
  %s0 = inlined_call_operand.vmem [shape: f32[2,18,128], index: 0, kind: input, shape index: {}]
  %s1 = inlined_call_operand.hbm [shape: f32[3,128,128], index: 1, kind: input, shape index: {}]
  %s2 = inlined_call_operand.hbm [shape: f32[3,128,128], index: 2, kind: input, shape index: {}]
  %s3 = inlined_call_operand.vmem [shape: f32[1,128], index: 3, kind: input, shape index: {}]
  %s4 = inlined_call_operand.vmem [shape: f32[1,128], index: 4, kind: input, shape index: {}]
  %s5 = inlined_call_operand.vmem [shape: f32[1,128], index: 5, kind: input, shape index: {}]
  %s6 = inlined_call_operand.vmem [shape: f32[1,128], index: 6, kind: input, shape index: {}]
  %s7 = inlined_call_operand.hbm [shape: f32[128,128], index: 7, kind: input, shape index: {}]
  %s8 = inlined_call_operand.hbm [shape: f32[32,128], index: 8, kind: output, shape index: {}]
  %s9 = sld [smem:[#allocation0]]
  $region54: #{tpu_custom_call.1} parent=0
    _
  %s11 = ssub.s32 1, %s9
  %s12 = scalar_select 0, %s11, %s9
  $region1: #{tpu_custom_call.1} parent=0
    #allocation3 [shape = 'u8[196608]{0}', space=vmem, size = 0x30000, scoped, tag = 'input window, operand 1, single buffered']
    #allocation4 [shape = 's32[1]{0}', space=sflag, size = 0x4, scoped, tag = 'scoped memory for tpu_custom_call.1']
    #allocation5 [shape = 's32[1]{0}', space=sflag, size = 0x4, scoped, tag = 'scoped memory for tpu_custom_call.1']
    #allocation6 [shape = 'u8[196608]{0}', space=vmem, size = 0x30000, scoped, tag = 'input window, operand 2, single buffered']
    #allocation7 [shape = 's32[1]{0}', space=sflag, size = 0x4, scoped, tag = 'scoped memory for tpu_custom_call.1']
    #allocation8 [shape = 'u8[65536]{0}', space=vmem, size = 0x10000, scoped, tag = 'input window, operand 7, single buffered']
    #allocation9 [shape = 'u8[16384]{0}', space=vmem, size = 0x4000, scoped, tag = 'output window, operand 0, single buffered']
    %13 = vsyncpa [#allocation4], 0
    %14 = vsyncpa [#allocation7], 0
    %15 = vsyncpa [#allocation5], 0
    // Predicated region
    $region2: #{tpu_custom_call.1} parent=1 // pred_check
      _
    $region3: #{tpu_custom_call.1} parent=1 // pred_check_branch
      %17 = sbr.rel (0) target = $region5
    $region4: #{tpu_custom_call.1} parent=1 // pred_region
      _
    $region5: #{tpu_custom_call.1} parent=1 // pred_fallthru
      _
    // Predicated region
    $region6: #{tpu_custom_call.1} parent=1 // pred_check
      _
    $region7: #{tpu_custom_call.1} parent=1 // pred_check_branch
      %19 = sbr.rel (0) target = $region9
    $region8: #{tpu_custom_call.1} parent=1 // pred_region
      %s21 = ssub.s32 6144, 6144
      %22 = vsyncadd [#allocation4], %s21
      %s23 = sshll.u32 [#allocation3], 4
      %s24 = int_to_ptr.vmem [resolvable:$true] %s23
      %29 = dma.hbm_to_vmem [thread:$0]  %s1, 6144, %s24, [#allocation4], 128, 128, 8
    $region9: #{tpu_custom_call.1} parent=1 // pred_fallthru
      _
    // Predicated region
    $region10: #{tpu_custom_call.1} parent=1 // pred_check
      _
    $region11: #{tpu_custom_call.1} parent=1 // pred_check_branch
      %31 = sbr.rel (0) target = $region13
    $region12: #{tpu_custom_call.1} parent=1 // pred_region
      %s33 = ssub.s32 6144, 6144
      %34 = vsyncadd [#allocation7], %s33
      %s35 = sshll.u32 [#allocation6], 4
      %s36 = int_to_ptr.vmem [resolvable:$true] %s35
      %41 = dma.hbm_to_vmem [thread:$0]  %s2, 6144, %s36, [#allocation7], 128, 128, 8
    $region13: #{tpu_custom_call.1} parent=1 // pred_fallthru
      _
    // Predicated region
    $region14: #{tpu_custom_call.1} parent=1 // pred_check
      _
    $region15: #{tpu_custom_call.1} parent=1 // pred_check_branch
      %43 = sbr.rel (0) target = $region17
    $region16: #{tpu_custom_call.1} parent=1 // pred_region
      _
    $region17: #{tpu_custom_call.1} parent=1 // pred_fallthru
      _
    // Predicated region
    $region18: #{tpu_custom_call.1} parent=1 // pred_check
      _
    $region19: #{tpu_custom_call.1} parent=1 // pred_check_branch
      %45 = sbr.rel (0) target = $region21
    $region20: #{tpu_custom_call.1} parent=1 // pred_region
      _
    $region21: #{tpu_custom_call.1} parent=1 // pred_fallthru
      _
    // Predicated region
    $region22: #{tpu_custom_call.1} parent=1 // pred_check
      _
    $region23: #{tpu_custom_call.1} parent=1 // pred_check_branch
      %47 = sbr.rel (0) target = $region25
    $region24: #{tpu_custom_call.1} parent=1 // pred_region
      _
    $region25: #{tpu_custom_call.1} parent=1 // pred_fallthru
      _
    // Predicated region
    $region26: #{tpu_custom_call.1} parent=1 // pred_check
      _
    $region27: #{tpu_custom_call.1} parent=1 // pred_check_branch
      %49 = sbr.rel (0) target = $region29
    $region28: #{tpu_custom_call.1} parent=1 // pred_region
      _
    $region29: #{tpu_custom_call.1} parent=1 // pred_fallthru
      _
    // Predicated region
    $region30: #{tpu_custom_call.1} parent=1 // pred_check
      _
    $region31: #{tpu_custom_call.1} parent=1 // pred_check_branch
      %51 = sbr.rel (0) target = $region33
    $region32: #{tpu_custom_call.1} parent=1 // pred_region
      %s53 = ssub.s32 2048, 2048
      %54 = vsyncadd [#allocation7], %s53
      %s55 = sshll.u32 [#allocation8], 4
      %s56 = int_to_ptr.vmem [resolvable:$true] %s55
      %61 = dma.hbm_to_vmem [thread:$0]  %s7, 2048, %s56, [#allocation7], 128, 128, 8
    $region33: #{tpu_custom_call.1} parent=1 // pred_fallthru
      _
    // Predicated region
    $region34: #{tpu_custom_call.1} parent=1 // pred_check
      _
    $region35: #{tpu_custom_call.1} parent=1 // pred_check_branch
      %63 = sbr.rel (0) target = $region37
    $region36: #{tpu_custom_call.1} parent=1 // pred_region
      %64 = dma.done [#allocation4], 6144
    $region37: #{tpu_custom_call.1} parent=1 // pred_fallthru
      _
    // Predicated region
    $region38: #{tpu_custom_call.1} parent=1 // pred_check
      _
    $region39: #{tpu_custom_call.1} parent=1 // pred_check_branch
      %66 = sbr.rel (0) target = $region41
    $region40: #{tpu_custom_call.1} parent=1 // pred_region
      %67 = dma.done [#allocation7], 6144
    $region41: #{tpu_custom_call.1} parent=1 // pred_fallthru
      _
    // Predicated region
    $region42: #{tpu_custom_call.1} parent=1 // pred_check
      _
    $region43: #{tpu_custom_call.1} parent=1 // pred_check_branch
      %69 = sbr.rel (0) target = $region45
    $region44: #{tpu_custom_call.1} parent=1 // pred_region
      %70 = dma.done [#allocation7], 2048
    $region45: #{tpu_custom_call.1} parent=1 // pred_fallthru
      _
    %v71 = vld [vmem:[%s0] sm:$0xff]
    %v72 = vld [vmem:[%s0 + $0x8] sm:$0xff]
    %v73 = vld [vmem:[%s0 + $0x18] sm:$0xff]
    %v74 = vld [vmem:[%s0 + $0x20] sm:$0xff]
    %v75 = vld [vmem:[#allocation3] sm:$0xff]
    %v76 = vld [vmem:[#allocation3 + $0x8] sm:$0xff]
    %v77 = vld [vmem:[#allocation3 + $0x10] sm:$0xff]
    %v78 = vld [vmem:[#allocation3 + $0x18] sm:$0xff]
    %v79 = vld [vmem:[#allocation3 + $0x20] sm:$0xff]
    %v80 = vld [vmem:[#allocation3 + $0x28] sm:$0xff]
    %v81 = vld [vmem:[#allocation3 + $0x30] sm:$0xff]
    %v82 = vld [vmem:[#allocation3 + $0x38] sm:$0xff]
    %v83 = vld [vmem:[#allocation3 + $0x40] sm:$0xff]
    %v84 = vld [vmem:[#allocation3 + $0x48] sm:$0xff]
    %v85 = vld [vmem:[#allocation3 + $0x50] sm:$0xff]
    %v86 = vld [vmem:[#allocation3 + $0x58] sm:$0xff]
    %v87 = vld [vmem:[#allocation3 + $0x60] sm:$0xff]
    %v88 = vld [vmem:[#allocation3 + $0x68] sm:$0xff]
    %v89 = vld [vmem:[#allocation3 + $0x70] sm:$0xff]
    %v90 = vld [vmem:[#allocation3 + $0x78] sm:$0xff]
    %v91 = vld [vmem:[%s0 + $0x1] sm:$0xff]
    %v92 = vld [vmem:[%s0 + $0x9] sm:$0xff]
    %v93 = vld [vmem:[%s0 + $0x19] sm:$0xff]
    %v94 = vld [vmem:[%s0 + $0x21] sm:$0xff]
    %s95 = scalar_lea.vmem [#allocation3], 128
    %v96 = vld [vmem:[%s95] sm:$0xff]
    %v97 = vld [vmem:[%s95 + $0x8] sm:$0xff]
    %v98 = vld [vmem:[%s95 + $0x10] sm:$0xff]
    %v99 = vld [vmem:[%s95 + $0x18] sm:$0xff]
    %v100 = vld [vmem:[%s95 + $0x20] sm:$0xff]
    %v101 = vld [vmem:[%s95 + $0x28] sm:$0xff]
    %v102 = vld [vmem:[%s95 + $0x30] sm:$0xff]
    %v103 = vld [vmem:[%s95 + $0x38] sm:$0xff]
    %v104 = vld [vmem:[%s95 + $0x40] sm:$0xff]
    %v105 = vld [vmem:[%s95 + $0x48] sm:$0xff]
    %v106 = vld [vmem:[%s95 + $0x50] sm:$0xff]
    %v107 = vld [vmem:[%s95 + $0x58] sm:$0xff]
    %v108 = vld [vmem:[%s95 + $0x60] sm:$0xff]
    %v109 = vld [vmem:[%s95 + $0x68] sm:$0xff]
    %v110 = vld [vmem:[%s95 + $0x70] sm:$0xff]
    %v111 = vld [vmem:[%s95 + $0x78] sm:$0xff]
    %112 = vmatprep.subr.mxu0 0.0
    %113 = vmatpush1.msra.mxu0 %v96
    %114 = vmatprep.subr.mxu0 0.0
    %115 = vmatpush1.msra.mxu0 %v97
    %116 = vmatprep.subr.mxu0 0.0
    %117 = vmatpush1.msra.mxu0 %v98
    %118 = vmatprep.subr.mxu0 0.0
    %119 = vmatpush1.msra.mxu0 %v99
    %120 = vmatprep.subr.mxu0 0.0
    %121 = vmatpush1.msra.mxu0 %v100
    %122 = vmatprep.subr.mxu0 0.0
    %123 = vmatpush1.msra.mxu0 %v101
    %124 = vmatprep.subr.mxu0 0.0
    %125 = vmatpush1.msra.mxu0 %v102
    %126 = vmatprep.subr.mxu0 0.0
    %127 = vmatpush1.msra.mxu0 %v103
    %128 = vmatprep.subr.mxu0 0.0
    %129 = vmatpush1.msra.mxu0 %v104
    %130 = vmatprep.subr.mxu0 0.0
    %131 = vmatpush1.msra.mxu0 %v105
    %132 = vmatprep.subr.mxu0 0.0
    %133 = vmatpush1.msra.mxu0 %v106
    %134 = vmatprep.subr.mxu0 0.0
    %135 = vmatpush1.msra.mxu0 %v107
    %136 = vmatprep.subr.mxu0 0.0
    %137 = vmatpush1.msra.mxu0 %v108
    %138 = vmatprep.subr.mxu0 0.0
    %139 = vmatpush1.msra.mxu0 %v109
    %140 = vmatprep.subr.mxu0 0.0
    %141 = vmatpush1.msra.mxu0 %v110
    %142 = vmatprep.subr.mxu0 0.0
    %143 = vmatpush1.msra.mxu0 %v111
    %144 = vmatprep.subr.mxu0 0.0
    %145 = vmatpush1.msra.mxu0 0.0
    %146 = vmatprep.subr.mxu0 0.0
    %147 = vmatpush1.msra.mxu0 0.0
    %148 = vmatprep.subr.mxu0 0.0
    %149 = vmatpush1.msra.mxu0 0.0
    %150 = vmatprep.subr.mxu0 0.0
    %151 = vmatpush1.msra.mxu0 0.0
    %152 = vmatprep.subr.mxu0 0.0
    %153 = vmatpush1.msra.mxu0 0.0
    %154 = vmatprep.subr.mxu0 0.0
    %155 = vmatpush1.msra.mxu0 0.0
    %156 = vmatprep.subr.mxu0 0.0
    %157 = vmatpush1.msra.mxu0 0.0
    %158 = vmatprep.subr.mxu0 0.0
    %159 = vmatpush1.msra.mxu0 0.0
    %160 = vmatprep.subr.mxu0 0.0
    %161 = vmatpush1.msra.mxu0 0.0
    %162 = vmatprep.subr.mxu0 0.0
    %163 = vmatpush1.msra.mxu0 0.0
    %164 = vmatprep.subr.mxu0 0.0
    %165 = vmatpush1.msra.mxu0 0.0
    %166 = vmatprep.subr.mxu0 0.0
    %167 = vmatpush1.msra.mxu0 0.0
    %168 = vmatprep.subr.mxu0 0.0
    %169 = vmatpush1.msra.mxu0 0.0
    %170 = vmatprep.subr.mxu0 0.0
    %171 = vmatpush1.msra.mxu0 0.0
    %172 = vmatprep.subr.mxu0 0.0
    %173 = vmatpush1.msra.mxu0 0.0
    %174 = vmatprep.subr.mxu0 0.0
    %175 = vmatpush1.msra.mxu0 0.0
    %176 = vmatprep.mubr.f32.mxu0 0.0
    %177 = vmatmul.mubr.f32.gmra.mrb[0].mxu0 %v91
    %v178 = vpop.f32.mrb[0].mxu0
    %v179 = vadd.f32 0.0, %v178
    %v180 = vpop.f32.mrb[0].mxu0
    %181 = vmatprep.mubr.f32.mxu0 0.0
    %182 = vmatmul.mubr.f32.gmra.mrb[0].mxu0 %v92
    %v183 = vpop.f32.mrb[0].mxu0
    %v184 = vadd.f32 0.0, %v183
    %v185 = vpop.f32.mrb[0].mxu0
    %186 = vmatprep.mubr.f32.mxu0 0.0
    %187 = vmatmul.mubr.f32.gmra.mrb[0].mxu0 %v93
    %v188 = vpop.f32.mrb[0].mxu0
    %v189 = vadd.f32 0.0, %v188
    %v190 = vpop.f32.mrb[0].mxu0
    %191 = vmatprep.mubr.f32.mxu0 0.0
    %192 = vmatmul.mubr.f32.gmra.mrb[0].mxu0 %v94
    %v193 = vpop.f32.mrb[0].mxu0
    %v194 = vadd.f32 0.0, %v193
    %v195 = vpop.f32.mrb[0].mxu0
    %196 = vdwg.mxu0
    %197 = vmatprep.subr.mxu0 0.0
    %198 = vmatpush1.msra.mxu0 %v75
    %199 = vmatprep.subr.mxu0 0.0
    %200 = vmatpush1.msra.mxu0 %v76
    %201 = vmatprep.subr.mxu0 0.0
    %202 = vmatpush1.msra.mxu0 %v77
    %203 = vmatprep.subr.mxu0 0.0
    %204 = vmatpush1.msra.mxu0 %v78
    %205 = vmatprep.subr.mxu0 0.0
    %206 = vmatpush1.msra.mxu0 %v79
    %207 = vmatprep.subr.mxu0 0.0
    %208 = vmatpush1.msra.mxu0 %v80
    %209 = vmatprep.subr.mxu0 0.0
    %210 = vmatpush1.msra.mxu0 %v81
    %211 = vmatprep.subr.mxu0 0.0
    %212 = vmatpush1.msra.mxu0 %v82
    %213 = vmatprep.subr.mxu0 0.0
    %214 = vmatpush1.msra.mxu0 %v83
    %215 = vmatprep.subr.mxu0 0.0
    %216 = vmatpush1.msra.mxu0 %v84
    %217 = vmatprep.subr.mxu0 0.0
    %218 = vmatpush1.msra.mxu0 %v85
    %219 = vmatprep.subr.mxu0 0.0
    %220 = vmatpush1.msra.mxu0 %v86
    %221 = vmatprep.subr.mxu0 0.0
    %222 = vmatpush1.msra.mxu0 %v87
    %223 = vmatprep.subr.mxu0 0.0
    %224 = vmatpush1.msra.mxu0 %v88
    %225 = vmatprep.subr.mxu0 0.0
    %226 = vmatpush1.msra.mxu0 %v89
    %227 = vmatprep.subr.mxu0 0.0
    %228 = vmatpush1.msra.mxu0 %v90
    %229 = vmatprep.subr.mxu0 0.0
    %230 = vmatpush1.msra.mxu0 0.0
    %231 = vmatprep.subr.mxu0 0.0
    %232 = vmatpush1.msra.mxu0 0.0
    %233 = vmatprep.subr.mxu0 0.0
    %234 = vmatpush1.msra.mxu0 0.0
    %235 = vmatprep.subr.mxu0 0.0
    %236 = vmatpush1.msra.mxu0 0.0
    %237 = vmatprep.subr.mxu0 0.0
    %238 = vmatpush1.msra.mxu0 0.0
    %239 = vmatprep.subr.mxu0 0.0
    %240 = vmatpush1.msra.mxu0 0.0
    %241 = vmatprep.subr.mxu0 0.0
    %242 = vmatpush1.msra.mxu0 0.0
    %243 = vmatprep.subr.mxu0 0.0
    %244 = vmatpush1.msra.mxu0 0.0
    %245 = vmatprep.subr.mxu0 0.0
    %246 = vmatpush1.msra.mxu0 0.0
    %247 = vmatprep.subr.mxu0 0.0
    %248 = vmatpush1.msra.mxu0 0.0
    %249 = vmatprep.subr.mxu0 0.0
    %250 = vmatpush1.msra.mxu0 0.0
    %251 = vmatprep.subr.mxu0 0.0
    %252 = vmatpush1.msra.mxu0 0.0
    %253 = vmatprep.subr.mxu0 0.0
    %254 = vmatpush1.msra.mxu0 0.0
    %255 = vmatprep.subr.mxu0 0.0
    %256 = vmatpush1.msra.mxu0 0.0
    %257 = vmatprep.subr.mxu0 0.0
    %258 = vmatpush1.msra.mxu0 0.0
    %259 = vmatprep.subr.mxu0 0.0
    %260 = vmatpush1.msra.mxu0 0.0
    %261 = vmatprep.mubr.f32.mxu0 0.0
    %262 = vmatmul.mubr.f32.gmra.mrb[0].mxu0 %v71
    %v263 = vpop.f32.mrb[0].mxu0
    %v264 = vadd.f32 %v179, %v263
    %v265 = vpop.f32.mrb[0].mxu0
    %266 = vmatprep.mubr.f32.mxu0 0.0
    %267 = vmatmul.mubr.f32.gmra.mrb[0].mxu0 %v72
    %v268 = vpop.f32.mrb[0].mxu0
    %v269 = vadd.f32 %v184, %v268
    %v270 = vpop.f32.mrb[0].mxu0
    %271 = vmatprep.mubr.f32.mxu0 0.0
    %272 = vmatmul.mubr.f32.gmra.mrb[0].mxu0 %v73
    %v273 = vpop.f32.mrb[0].mxu0
    %v274 = vadd.f32 %v189, %v273
    %v275 = vpop.f32.mrb[0].mxu0
    %276 = vmatprep.mubr.f32.mxu0 0.0
    %277 = vmatmul.mubr.f32.gmra.mrb[0].mxu0 %v74
    %v278 = vpop.f32.mrb[0].mxu0
    %v279 = vadd.f32 %v194, %v278
    %v280 = vpop.f32.mrb[0].mxu0
    %281 = vdwg.mxu0
    %v282 = vld [vmem:[%s0 + $0x2] sm:$0xff]
    %v283 = vld [vmem:[%s0 + $0xa] sm:$0xff]
    %v284 = vld [vmem:[%s0 + $0x1a] sm:$0xff]
    %v285 = vld [vmem:[%s0 + $0x22] sm:$0xff]
    %s286 = scalar_lea.vmem [#allocation3], 256
    %v287 = vld [vmem:[%s286] sm:$0xff]
    %v288 = vld [vmem:[%s286 + $0x8] sm:$0xff]
    %v289 = vld [vmem:[%s286 + $0x10] sm:$0xff]
    %v290 = vld [vmem:[%s286 + $0x18] sm:$0xff]
    %v291 = vld [vmem:[%s286 + $0x20] sm:$0xff]
    %v292 = vld [vmem:[%s286 + $0x28] sm:$0xff]
    %v293 = vld [vmem:[%s286 + $0x30] sm:$0xff]
    %v294 = vld [vmem:[%s286 + $0x38] sm:$0xff]
    %v295 = vld [vmem:[%s286 + $0x40] sm:$0xff]
    %v296 = vld [vmem:[%s286 + $0x48] sm:$0xff]
    %v297 = vld [vmem:[%s286 + $0x50] sm:$0xff]
    %v298 = vld [vmem:[%s286 + $0x58] sm:$0xff]
    %v299 = vld [vmem:[%s286 + $0x60] sm:$0xff]
    %v300 = vld [vmem:[%s286 + $0x68] sm:$0xff]
    %v301 = vld [vmem:[%s286 + $0x70] sm:$0xff]
    %v302 = vld [vmem:[%s286 + $0x78] sm:$0xff]
    %303 = vmatprep.subr.mxu0 0.0
    %304 = vmatpush1.msra.mxu0 %v287
    %305 = vmatprep.subr.mxu0 0.0
    %306 = vmatpush1.msra.mxu0 %v288
    %307 = vmatprep.subr.mxu0 0.0
    %308 = vmatpush1.msra.mxu0 %v289
    %309 = vmatprep.subr.mxu0 0.0
    %310 = vmatpush1.msra.mxu0 %v290
    %311 = vmatprep.subr.mxu0 0.0
    %312 = vmatpush1.msra.mxu0 %v291
    %313 = vmatprep.subr.mxu0 0.0
    %314 = vmatpush1.msra.mxu0 %v292
    %315 = vmatprep.subr.mxu0 0.0
    %316 = vmatpush1.msra.mxu0 %v293
    %317 = vmatprep.subr.mxu0 0.0
    %318 = vmatpush1.msra.mxu0 %v294
    %319 = vmatprep.subr.mxu0 0.0
    %320 = vmatpush1.msra.mxu0 %v295
    %321 = vmatprep.subr.mxu0 0.0
    %322 = vmatpush1.msra.mxu0 %v296
    %323 = vmatprep.subr.mxu0 0.0
    %324 = vmatpush1.msra.mxu0 %v297
    %325 = vmatprep.subr.mxu0 0.0
    %326 = vmatpush1.msra.mxu0 %v298
    %327 = vmatprep.subr.mxu0 0.0
    %328 = vmatpush1.msra.mxu0 %v299
    %329 = vmatprep.subr.mxu0 0.0
    %330 = vmatpush1.msra.mxu0 %v300
    %331 = vmatprep.subr.mxu0 0.0
    %332 = vmatpush1.msra.mxu0 %v301
    %333 = vmatprep.subr.mxu0 0.0
    %334 = vmatpush1.msra.mxu0 %v302
    %335 = vmatprep.subr.mxu0 0.0
    %336 = vmatpush1.msra.mxu0 0.0
    %337 = vmatprep.subr.mxu0 0.0
    %338 = vmatpush1.msra.mxu0 0.0
    %339 = vmatprep.subr.mxu0 0.0
    %340 = vmatpush1.msra.mxu0 0.0
    %341 = vmatprep.subr.mxu0 0.0
    %342 = vmatpush1.msra.mxu0 0.0
    %343 = vmatprep.subr.mxu0 0.0
    %344 = vmatpush1.msra.mxu0 0.0
    %345 = vmatprep.subr.mxu0 0.0
    %346 = vmatpush1.msra.mxu0 0.0
    %347 = vmatprep.subr.mxu0 0.0
    %348 = vmatpush1.msra.mxu0 0.0
    %349 = vmatprep.subr.mxu0 0.0
    %350 = vmatpush1.msra.mxu0 0.0
    %351 = vmatprep.subr.mxu0 0.0
    %352 = vmatpush1.msra.mxu0 0.0
    %353 = vmatprep.subr.mxu0 0.0
    %354 = vmatpush1.msra.mxu0 0.0
    %355 = vmatprep.subr.mxu0 0.0
    %356 = vmatpush1.msra.mxu0 0.0
    %357 = vmatprep.subr.mxu0 0.0
    %358 = vmatpush1.msra.mxu0 0.0
    %359 = vmatprep.subr.mxu0 0.0
    %360 = vmatpush1.msra.mxu0 0.0
    %361 = vmatprep.subr.mxu0 0.0
    %362 = vmatpush1.msra.mxu0 0.0
    %363 = vmatprep.subr.mxu0 0.0
    %364 = vmatpush1.msra.mxu0 0.0
    %365 = vmatprep.subr.mxu0 0.0
    %366 = vmatpush1.msra.mxu0 0.0
    %367 = vmatprep.mubr.f32.mxu0 0.0
    %368 = vmatmul.mubr.f32.gmra.mrb[0].mxu0 %v282
    %v369 = vpop.f32.mrb[0].mxu0
    %v370 = vadd.f32 0.0, %v369
    %v371 = vpop.f32.mrb[0].mxu0
    %372 = vmatprep.mubr.f32.mxu0 0.0
    %373 = vmatmul.mubr.f32.gmra.mrb[0].mxu0 %v283
    %v374 = vpop.f32.mrb[0].mxu0
    %v375 = vadd.f32 0.0, %v374
    %v376 = vpop.f32.mrb[0].mxu0
    %377 = vmatprep.mubr.f32.mxu0 0.0
    %378 = vmatmul.mubr.f32.gmra.mrb[0].mxu0 %v284
    %v379 = vpop.f32.mrb[0].mxu0
    %v380 = vadd.f32 0.0, %v379
    %v381 = vpop.f32.mrb[0].mxu0
    %382 = vmatprep.mubr.f32.mxu0 0.0
    %383 = vmatmul.mubr.f32.gmra.mrb[0].mxu0 %v285
    %v384 = vpop.f32.mrb[0].mxu0
    %v385 = vadd.f32 0.0, %v384
    %v386 = vpop.f32.mrb[0].mxu0
    %387 = vdwg.mxu0
    %v388 = vadd.f32 %v264, %v370
    %v389 = vadd.f32 %v269, %v375
    %v390 = vadd.f32 %v274, %v380
    %v391 = vadd.f32 %v279, %v385
    %v392 = vld [vmem:[#allocation8] sm:$0xff]
    %v393 = vld [vmem:[#allocation8 + $0x8] sm:$0xff]
    %v394 = vld [vmem:[#allocation8 + $0x10] sm:$0xff]
    %v395 = vld [vmem:[#allocation8 + $0x18] sm:$0xff]
    %v396 = vld [vmem:[#allocation8 + $0x20] sm:$0xff]
    %v397 = vld [vmem:[#allocation8 + $0x28] sm:$0xff]
    %v398 = vld [vmem:[#allocation8 + $0x30] sm:$0xff]
    %v399 = vld [vmem:[#allocation8 + $0x38] sm:$0xff]
    %v400 = vld [vmem:[#allocation8 + $0x40] sm:$0xff]
    %v401 = vld [vmem:[#allocation8 + $0x48] sm:$0xff]
    %v402 = vld [vmem:[#allocation8 + $0x50] sm:$0xff]
    %v403 = vld [vmem:[#allocation8 + $0x58] sm:$0xff]
    %v404 = vld [vmem:[#allocation8 + $0x60] sm:$0xff]
    %v405 = vld [vmem:[#allocation8 + $0x68] sm:$0xff]
    %v406 = vld [vmem:[#allocation8 + $0x70] sm:$0xff]
    %v407 = vld [vmem:[#allocation8 + $0x78] sm:$0xff]
    %v408 = vadd.f32 %v388, %v389
    %v409 = vadd.f32 %v408, %v390
    %v410 = vadd.f32 %v409, %v391
    %v411 = vrot.slane %v410, 4
    %v412 = vadd.f32 %v410, %v411
    %v413 = vrot.slane %v412, 2
    %v414 = vadd.f32 %v412, %v413
    %v415 = vrot.slane %v414, 1
    %v416 = vadd.f32 %v414, %v415
    %v417 = vmul.f32 %v388, %v388
    %v418 = vmul.f32 %v389, %v389
    %v419 = vmul.f32 %v390, %v390
    %v420 = vmul.f32 %v391, %v391
    %v421 = vadd.f32 %v417, %v418
    %v422 = vadd.f32 %v421, %v419
    %v423 = vadd.f32 %v422, %v420
    %v424 = vrot.slane %v423, 4
    %v425 = vadd.f32 %v423, %v424
    %v426 = vrot.slane %v425, 2
    %v427 = vadd.f32 %v425, %v426
    %v428 = vrot.slane %v427, 1
    %v429 = vadd.f32 %v427, %v428
    %430 = vmatprep.subr.mxu0 0.0
    %431 = vmatpush1.msra.mxu0 %v392
    %432 = vmatprep.subr.mxu0 0.0
    %433 = vmatpush1.msra.mxu0 %v393
    %434 = vmatprep.subr.mxu0 0.0
    %435 = vmatpush1.msra.mxu0 %v394
    %436 = vmatprep.subr.mxu0 0.0
    %437 = vmatpush1.msra.mxu0 %v395
    %438 = vmatprep.subr.mxu0 0.0
    %439 = vmatpush1.msra.mxu0 %v396
    %440 = vmatprep.subr.mxu0 0.0
    %441 = vmatpush1.msra.mxu0 %v397
    %442 = vmatprep.subr.mxu0 0.0
    %443 = vmatpush1.msra.mxu0 %v398
    %444 = vmatprep.subr.mxu0 0.0
    %445 = vmatpush1.msra.mxu0 %v399
    %446 = vmatprep.subr.mxu0 0.0
    %447 = vmatpush1.msra.mxu0 %v400
    %448 = vmatprep.subr.mxu0 0.0
    %449 = vmatpush1.msra.mxu0 %v401
    %450 = vmatprep.subr.mxu0 0.0
    %451 = vmatpush1.msra.mxu0 %v402
    %452 = vmatprep.subr.mxu0 0.0
    %453 = vmatpush1.msra.mxu0 %v403
    %454 = vmatprep.subr.mxu0 0.0
    %455 = vmatpush1.msra.mxu0 %v404
    %456 = vmatprep.subr.mxu0 0.0
    %457 = vmatpush1.msra.mxu0 %v405
    %458 = vmatprep.subr.mxu0 0.0
    %459 = vmatpush1.msra.mxu0 %v406
    %460 = vmatprep.subr.mxu0 0.0
    %461 = vmatpush1.msra.mxu0 %v407
    %462 = vmatprep.subr.mxu0 0.0
    %463 = vmatpush1.msra.mxu0 0.0
    %464 = vmatprep.subr.mxu0 0.0
    %465 = vmatpush1.msra.mxu0 0.0
    %466 = vmatprep.subr.mxu0 0.0
    %467 = vmatpush1.msra.mxu0 0.0
    %468 = vmatprep.subr.mxu0 0.0
    %469 = vmatpush1.msra.mxu0 0.0
    %470 = vmatprep.subr.mxu0 0.0
    %471 = vmatpush1.msra.mxu0 0.0
    %472 = vmatprep.subr.mxu0 0.0
    %473 = vmatpush1.msra.mxu0 0.0
    %474 = vmatprep.subr.mxu0 0.0
    %475 = vmatpush1.msra.mxu0 0.0
    %476 = vmatprep.subr.mxu0 0.0
    %477 = vmatpush1.msra.mxu0 0.0
    %478 = vmatprep.subr.mxu0 0.0
    %479 = vmatpush1.msra.mxu0 0.0
    %480 = vmatprep.subr.mxu0 0.0
    %481 = vmatpush1.msra.mxu0 0.0
    %482 = vmatprep.subr.mxu0 0.0
    %483 = vmatpush1.msra.mxu0 0.0
    %484 = vmatprep.subr.mxu0 0.0
    %485 = vmatpush1.msra.mxu0 0.0
    %486 = vmatprep.subr.mxu0 0.0
    %487 = vmatpush1.msra.mxu0 0.0
    %488 = vmatprep.subr.mxu0 0.0
    %489 = vmatpush1.msra.mxu0 0.0
    %490 = vmatprep.subr.mxu0 0.0
    %491 = vmatpush1.msra.mxu0 0.0
    %492 = vmatprep.subr.mxu0 0.0
    %493 = vmatpush1.msra.mxu0 0.0
    %494 = vmatprep.mubr.f32.mxu0 0.0
    %495 = vmatmul.mubr.f32.gmra.mrb[0].mxu0 %v416
    %v496 = vpop.f32.mrb[0].mxu0
    %v497 = vadd.f32 0.0, %v496
    %v498 = vpop.f32.mrb[0].mxu0
    %499 = vdwg.mxu0
    %500 = vmatprep.subr.mxu0 0.0
    %501 = vmatpush1.msra.mxu0 %v392
    %502 = vmatprep.subr.mxu0 0.0
    %503 = vmatpush1.msra.mxu0 %v393
    %504 = vmatprep.subr.mxu0 0.0
    %505 = vmatpush1.msra.mxu0 %v394
    %506 = vmatprep.subr.mxu0 0.0
    %507 = vmatpush1.msra.mxu0 %v395
    %508 = vmatprep.subr.mxu0 0.0
    %509 = vmatpush1.msra.mxu0 %v396
    %510 = vmatprep.subr.mxu0 0.0
    %511 = vmatpush1.msra.mxu0 %v397
    %512 = vmatprep.subr.mxu0 0.0
    %513 = vmatpush1.msra.mxu0 %v398
    %514 = vmatprep.subr.mxu0 0.0
    %515 = vmatpush1.msra.mxu0 %v399
    %516 = vmatprep.subr.mxu0 0.0
    %517 = vmatpush1.msra.mxu0 %v400
    %518 = vmatprep.subr.mxu0 0.0
    %519 = vmatpush1.msra.mxu0 %v401
    %520 = vmatprep.subr.mxu0 0.0
    %521 = vmatpush1.msra.mxu0 %v402
    %522 = vmatprep.subr.mxu0 0.0
    %523 = vmatpush1.msra.mxu0 %v403
    %524 = vmatprep.subr.mxu0 0.0
    %525 = vmatpush1.msra.mxu0 %v404
    %526 = vmatprep.subr.mxu0 0.0
    %527 = vmatpush1.msra.mxu0 %v405
    %528 = vmatprep.subr.mxu0 0.0
    %529 = vmatpush1.msra.mxu0 %v406
    %530 = vmatprep.subr.mxu0 0.0
    %531 = vmatpush1.msra.mxu0 %v407
    %532 = vmatprep.subr.mxu0 0.0
    %533 = vmatpush1.msra.mxu0 0.0
    %534 = vmatprep.subr.mxu0 0.0
    %535 = vmatpush1.msra.mxu0 0.0
    %536 = vmatprep.subr.mxu0 0.0
    %537 = vmatpush1.msra.mxu0 0.0
    %538 = vmatprep.subr.mxu0 0.0
    %539 = vmatpush1.msra.mxu0 0.0
    %540 = vmatprep.subr.mxu0 0.0
    %541 = vmatpush1.msra.mxu0 0.0
    %542 = vmatprep.subr.mxu0 0.0
    %543 = vmatpush1.msra.mxu0 0.0
    %544 = vmatprep.subr.mxu0 0.0
    %545 = vmatpush1.msra.mxu0 0.0
    %546 = vmatprep.subr.mxu0 0.0
    %547 = vmatpush1.msra.mxu0 0.0
    %548 = vmatprep.subr.mxu0 0.0
    %549 = vmatpush1.msra.mxu0 0.0
    %550 = vmatprep.subr.mxu0 0.0
    %551 = vmatpush1.msra.mxu0 0.0
    %552 = vmatprep.subr.mxu0 0.0
    %553 = vmatpush1.msra.mxu0 0.0
    %554 = vmatprep.subr.mxu0 0.0
    %555 = vmatpush1.msra.mxu0 0.0
    %556 = vmatprep.subr.mxu0 0.0
    %557 = vmatpush1.msra.mxu0 0.0
    %558 = vmatprep.subr.mxu0 0.0
    %559 = vmatpush1.msra.mxu0 0.0
    %560 = vmatprep.subr.mxu0 0.0
    %561 = vmatpush1.msra.mxu0 0.0
    %562 = vmatprep.subr.mxu0 0.0
    %563 = vmatpush1.msra.mxu0 0.0
    %564 = vmatprep.mubr.f32.mxu0 0.0
    %565 = vmatmul.mubr.f32.gmra.mrb[0].mxu0 %v429
    %v566 = vpop.f32.mrb[0].mxu0
    %v567 = vadd.f32 0.0, %v566
    %v568 = vpop.f32.mrb[0].mxu0
    %569 = vdwg.mxu0
    %v570 = vmul.f32 %v497, 0.001953125
    %v571 = vmul.f32 %v567, 0.001953125
    %v572 = vmul.f32 %v570, %v570
    %v573 = vsub.f32 %v571, %v572
    %v574 = vld [vmem:[%s3] sm:$0x1]
    %v575 = vadd.f32 %v573, 1e-05
    %v576 = vrsqrt.pop %v575
    %v577 = vmul.f32 %v574, %v576
    %v578 = vld [vmem:[%s4] sm:$0x1]
    %v579 = vmul.f32 %v570, %v577
    %v580 = vsub.f32 %v578, %v579
    %v582 = vlaneseq
    %v583 = vshrl.u32 %v582, 7
    %v584 = vsub.s32 0, %v583
    %v585 = vrot.slane %v577, %v584
    %v587 = vmul.f32 %v388, %v585
    %v588 = vmul.f32 %v389, %v585
    %v589 = vmul.f32 %v390, %v585
    %v590 = vmul.f32 %v391, %v585
    %v592 = vlaneseq
    %v593 = vshrl.u32 %v592, 7
    %v594 = vsub.s32 0, %v593
    %v595 = vrot.slane %v580, %v594
    %v597 = vadd.f32 %v587, %v595
    %v598 = vadd.f32 %v588, %v595
    %v599 = vadd.f32 %v589, %v595
    %v600 = vadd.f32 %v590, %v595
    %v601 = vmax.f32 %v597, 0.0
    %v602 = vmax.f32 %v598, 0.0
    %v603 = vmax.f32 %v599, 0.0
    %v604 = vmax.f32 %v600, 0.0
    %605 = vst [vmem:[#allocation2] sm:$0xff] 0.0
    %606 = vst [vmem:[#allocation2 + $0x8] sm:$0xff] 0.0
    %607 = vst [vmem:[#allocation2 + $0x10] sm:$0x3] 0.0
    %608 = vst [vmem:[#allocation2 + $0x18] sm:$0xff] 0.0
    %609 = vst [vmem:[#allocation2 + $0x20] sm:$0xff] 0.0
    %610 = vst [vmem:[#allocation2 + $0x28] sm:$0x3] 0.0
    %611 = vst [vmem:[#allocation2 + $0x1] sm:$0xff] %v601
    %612 = vst [vmem:[#allocation2 + $0x9] sm:$0xff] %v602
    %613 = vst [vmem:[#allocation2 + $0x19] sm:$0xff] %v603
    %614 = vst [vmem:[#allocation2 + $0x21] sm:$0xff] %v604
    %v615 = vld [vmem:[#allocation2] sm:$0xff]
    %v616 = vld [vmem:[#allocation2 + $0x8] sm:$0xff]
    %v617 = vld [vmem:[#allocation2 + $0x18] sm:$0xff]
    %v618 = vld [vmem:[#allocation2 + $0x20] sm:$0xff]
    %v619 = vld [vmem:[#allocation6] sm:$0xff]
    %v620 = vld [vmem:[#allocation6 + $0x8] sm:$0xff]
    %v621 = vld [vmem:[#allocation6 + $0x10] sm:$0xff]
    %v622 = vld [vmem:[#allocation6 + $0x18] sm:$0xff]
    %v623 = vld [vmem:[#allocation6 + $0x20] sm:$0xff]
    %v624 = vld [vmem:[#allocation6 + $0x28] sm:$0xff]
    %v625 = vld [vmem:[#allocation6 + $0x30] sm:$0xff]
    %v626 = vld [vmem:[#allocation6 + $0x38] sm:$0xff]
    %v627 = vld [vmem:[#allocation6 + $0x40] sm:$0xff]
    %v628 = vld [vmem:[#allocation6 + $0x48] sm:$0xff]
    %v629 = vld [vmem:[#allocation6 + $0x50] sm:$0xff]
    %v630 = vld [vmem:[#allocation6 + $0x58] sm:$0xff]
    %v631 = vld [vmem:[#allocation6 + $0x60] sm:$0xff]
    %v632 = vld [vmem:[#allocation6 + $0x68] sm:$0xff]
    %v633 = vld [vmem:[#allocation6 + $0x70] sm:$0xff]
    %v634 = vld [vmem:[#allocation6 + $0x78] sm:$0xff]
    %v635 = vld [vmem:[#allocation2 + $0x1] sm:$0xff]
    %v636 = vld [vmem:[#allocation2 + $0x9] sm:$0xff]
    %v637 = vld [vmem:[#allocation2 + $0x19] sm:$0xff]
    %v638 = vld [vmem:[#allocation2 + $0x21] sm:$0xff]
    %s639 = scalar_lea.vmem [#allocation6], 128
    %v640 = vld [vmem:[%s639] sm:$0xff]
    %v641 = vld [vmem:[%s639 + $0x8] sm:$0xff]
    %v642 = vld [vmem:[%s639 + $0x10] sm:$0xff]
    %v643 = vld [vmem:[%s639 + $0x18] sm:$0xff]
    %v644 = vld [vmem:[%s639 + $0x20] sm:$0xff]
    %v645 = vld [vmem:[%s639 + $0x28] sm:$0xff]
    %v646 = vld [vmem:[%s639 + $0x30] sm:$0xff]
    %v647 = vld [vmem:[%s639 + $0x38] sm:$0xff]
    %v648 = vld [vmem:[%s639 + $0x40] sm:$0xff]
    %v649 = vld [vmem:[%s639 + $0x48] sm:$0xff]
    %v650 = vld [vmem:[%s639 + $0x50] sm:$0xff]
    %v651 = vld [vmem:[%s639 + $0x58] sm:$0xff]
    %v652 = vld [vmem:[%s639 + $0x60] sm:$0xff]
    %v653 = vld [vmem:[%s639 + $0x68] sm:$0xff]
    %v654 = vld [vmem:[%s639 + $0x70] sm:$0xff]
    %v655 = vld [vmem:[%s639 + $0x78] sm:$0xff]
    %656 = vmatprep.subr.mxu0 0.0
    %657 = vmatpush1.msra.mxu0 %v640
    %658 = vmatprep.subr.mxu0 0.0
    %659 = vmatpush1.msra.mxu0 %v641
    %660 = vmatprep.subr.mxu0 0.0
    %661 = vmatpush1.msra.mxu0 %v642
    %662 = vmatprep.subr.mxu0 0.0
    %663 = vmatpush1.msra.mxu0 %v643
    %664 = vmatprep.subr.mxu0 0.0
    %665 = vmatpush1.msra.mxu0 %v644
    %666 = vmatprep.subr.mxu0 0.0
    %667 = vmatpush1.msra.mxu0 %v645
    %668 = vmatprep.subr.mxu0 0.0
    %669 = vmatpush1.msra.mxu0 %v646
    %670 = vmatprep.subr.mxu0 0.0
    %671 = vmatpush1.msra.mxu0 %v647
    %672 = vmatprep.subr.mxu0 0.0
    %673 = vmatpush1.msra.mxu0 %v648
    %674 = vmatprep.subr.mxu0 0.0
    %675 = vmatpush1.msra.mxu0 %v649
    %676 = vmatprep.subr.mxu0 0.0
    %677 = vmatpush1.msra.mxu0 %v650
    %678 = vmatprep.subr.mxu0 0.0
    %679 = vmatpush1.msra.mxu0 %v651
    %680 = vmatprep.subr.mxu0 0.0
    %681 = vmatpush1.msra.mxu0 %v652
    %682 = vmatprep.subr.mxu0 0.0
    %683 = vmatpush1.msra.mxu0 %v653
    %684 = vmatprep.subr.mxu0 0.0
    %685 = vmatpush1.msra.mxu0 %v654
    %686 = vmatprep.subr.mxu0 0.0
    %687 = vmatpush1.msra.mxu0 %v655
    %688 = vmatprep.subr.mxu0 0.0
    %689 = vmatpush1.msra.mxu0 0.0
    %690 = vmatprep.subr.mxu0 0.0
    %691 = vmatpush1.msra.mxu0 0.0
    %692 = vmatprep.subr.mxu0 0.0
    %693 = vmatpush1.msra.mxu0 0.0
    %694 = vmatprep.subr.mxu0 0.0
    %695 = vmatpush1.msra.mxu0 0.0
    %696 = vmatprep.subr.mxu0 0.0
    %697 = vmatpush1.msra.mxu0 0.0
    %698 = vmatprep.subr.mxu0 0.0
    %699 = vmatpush1.msra.mxu0 0.0
    %700 = vmatprep.subr.mxu0 0.0
    %701 = vmatpush1.msra.mxu0 0.0
    %702 = vmatprep.subr.mxu0 0.0
    %703 = vmatpush1.msra.mxu0 0.0
    %704 = vmatprep.subr.mxu0 0.0
    %705 = vmatpush1.msra.mxu0 0.0
    %706 = vmatprep.subr.mxu0 0.0
    %707 = vmatpush1.msra.mxu0 0.0
    %708 = vmatprep.subr.mxu0 0.0
    %709 = vmatpush1.msra.mxu0 0.0
    %710 = vmatprep.subr.mxu0 0.0
    %711 = vmatpush1.msra.mxu0 0.0
    %712 = vmatprep.subr.mxu0 0.0
    %713 = vmatpush1.msra.mxu0 0.0
    %714 = vmatprep.subr.mxu0 0.0
    %715 = vmatpush1.msra.mxu0 0.0
    %716 = vmatprep.subr.mxu0 0.0
    %717 = vmatpush1.msra.mxu0 0.0
    %718 = vmatprep.subr.mxu0 0.0
    %719 = vmatpush1.msra.mxu0 0.0
    %720 = vmatprep.mubr.f32.mxu0 0.0
    %721 = vmatmul.mubr.f32.gmra.mrb[0].mxu0 %v635
    %v722 = vpop.f32.mrb[0].mxu0
    %v723 = vadd.f32 0.0, %v722
    %v724 = vpop.f32.mrb[0].mxu0
    %725 = vmatprep.mubr.f32.mxu0 0.0
    %726 = vmatmul.mubr.f32.gmra.mrb[0].mxu0 %v636
    %v727 = vpop.f32.mrb[0].mxu0
    %v728 = vadd.f32 0.0, %v727
    %v729 = vpop.f32.mrb[0].mxu0
    %730 = vmatprep.mubr.f32.mxu0 0.0
    %731 = vmatmul.mubr.f32.gmra.mrb[0].mxu0 %v637
    %v732 = vpop.f32.mrb[0].mxu0
    %v733 = vadd.f32 0.0, %v732
    %v734 = vpop.f32.mrb[0].mxu0
    %735 = vmatprep.mubr.f32.mxu0 0.0
    %736 = vmatmul.mubr.f32.gmra.mrb[0].mxu0 %v638
    %v737 = vpop.f32.mrb[0].mxu0
    %v738 = vadd.f32 0.0, %v737
    %v739 = vpop.f32.mrb[0].mxu0
    %740 = vdwg.mxu0
    %741 = vmatprep.subr.mxu0 0.0
    %742 = vmatpush1.msra.mxu0 %v619
    %743 = vmatprep.subr.mxu0 0.0
    %744 = vmatpush1.msra.mxu0 %v620
    %745 = vmatprep.subr.mxu0 0.0
    %746 = vmatpush1.msra.mxu0 %v621
    %747 = vmatprep.subr.mxu0 0.0
    %748 = vmatpush1.msra.mxu0 %v622
    %749 = vmatprep.subr.mxu0 0.0
    %750 = vmatpush1.msra.mxu0 %v623
    %751 = vmatprep.subr.mxu0 0.0
    %752 = vmatpush1.msra.mxu0 %v624
    %753 = vmatprep.subr.mxu0 0.0
    %754 = vmatpush1.msra.mxu0 %v625
    %755 = vmatprep.subr.mxu0 0.0
    %756 = vmatpush1.msra.mxu0 %v626
    %757 = vmatprep.subr.mxu0 0.0
    %758 = vmatpush1.msra.mxu0 %v627
    %759 = vmatprep.subr.mxu0 0.0
    %760 = vmatpush1.msra.mxu0 %v628
    %761 = vmatprep.subr.mxu0 0.0
    %762 = vmatpush1.msra.mxu0 %v629
    %763 = vmatprep.subr.mxu0 0.0
    %764 = vmatpush1.msra.mxu0 %v630
    %765 = vmatprep.subr.mxu0 0.0
    %766 = vmatpush1.msra.mxu0 %v631
    %767 = vmatprep.subr.mxu0 0.0
    %768 = vmatpush1.msra.mxu0 %v632
    %769 = vmatprep.subr.mxu0 0.0
    %770 = vmatpush1.msra.mxu0 %v633
    %771 = vmatprep.subr.mxu0 0.0
    %772 = vmatpush1.msra.mxu0 %v634
    %773 = vmatprep.subr.mxu0 0.0
    %774 = vmatpush1.msra.mxu0 0.0
    %775 = vmatprep.subr.mxu0 0.0
    %776 = vmatpush1.msra.mxu0 0.0
    %777 = vmatprep.subr.mxu0 0.0
    %778 = vmatpush1.msra.mxu0 0.0
    %779 = vmatprep.subr.mxu0 0.0
    %780 = vmatpush1.msra.mxu0 0.0
    %781 = vmatprep.subr.mxu0 0.0
    %782 = vmatpush1.msra.mxu0 0.0
    %783 = vmatprep.subr.mxu0 0.0
    %784 = vmatpush1.msra.mxu0 0.0
    %785 = vmatprep.subr.mxu0 0.0
    %786 = vmatpush1.msra.mxu0 0.0
    %787 = vmatprep.subr.mxu0 0.0
    %788 = vmatpush1.msra.mxu0 0.0
    %789 = vmatprep.subr.mxu0 0.0
    %790 = vmatpush1.msra.mxu0 0.0
    %791 = vmatprep.subr.mxu0 0.0
    %792 = vmatpush1.msra.mxu0 0.0
    %793 = vmatprep.subr.mxu0 0.0
    %794 = vmatpush1.msra.mxu0 0.0
    %795 = vmatprep.subr.mxu0 0.0
    %796 = vmatpush1.msra.mxu0 0.0
    %797 = vmatprep.subr.mxu0 0.0
    %798 = vmatpush1.msra.mxu0 0.0
    %799 = vmatprep.subr.mxu0 0.0
    %800 = vmatpush1.msra.mxu0 0.0
    %801 = vmatprep.subr.mxu0 0.0
    %802 = vmatpush1.msra.mxu0 0.0
    %803 = vmatprep.subr.mxu0 0.0
    %804 = vmatpush1.msra.mxu0 0.0
    %805 = vmatprep.mubr.f32.mxu0 0.0
    %806 = vmatmul.mubr.f32.gmra.mrb[0].mxu0 %v615
    %v807 = vpop.f32.mrb[0].mxu0
    %v808 = vadd.f32 %v723, %v807
    %v809 = vpop.f32.mrb[0].mxu0
    %810 = vmatprep.mubr.f32.mxu0 0.0
    %811 = vmatmul.mubr.f32.gmra.mrb[0].mxu0 %v616
    %v812 = vpop.f32.mrb[0].mxu0
    %v813 = vadd.f32 %v728, %v812
    %v814 = vpop.f32.mrb[0].mxu0
    %815 = vmatprep.mubr.f32.mxu0 0.0
    %816 = vmatmul.mubr.f32.gmra.mrb[0].mxu0 %v617
    %v817 = vpop.f32.mrb[0].mxu0
    %v818 = vadd.f32 %v733, %v817
    %v819 = vpop.f32.mrb[0].mxu0
    %820 = vmatprep.mubr.f32.mxu0 0.0
    %821 = vmatmul.mubr.f32.gmra.mrb[0].mxu0 %v618
    %v822 = vpop.f32.mrb[0].mxu0
    %v823 = vadd.f32 %v738, %v822
    %v824 = vpop.f32.mrb[0].mxu0
    %825 = vdwg.mxu0
    %v826 = vld [vmem:[#allocation2 + $0x2] sm:$0xff]
    %v827 = vld [vmem:[#allocation2 + $0xa] sm:$0xff]
    %v828 = vld [vmem:[#allocation2 + $0x1a] sm:$0xff]
    %v829 = vld [vmem:[#allocation2 + $0x22] sm:$0xff]
    %s830 = scalar_lea.vmem [#allocation6], 256
    %v831 = vld [vmem:[%s830] sm:$0xff]
    %v832 = vld [vmem:[%s830 + $0x8] sm:$0xff]
    %v833 = vld [vmem:[%s830 + $0x10] sm:$0xff]
    %v834 = vld [vmem:[%s830 + $0x18] sm:$0xff]
    %v835 = vld [vmem:[%s830 + $0x20] sm:$0xff]
    %v836 = vld [vmem:[%s830 + $0x28] sm:$0xff]
    %v837 = vld [vmem:[%s830 + $0x30] sm:$0xff]
    %v838 = vld [vmem:[%s830 + $0x38] sm:$0xff]
    %v839 = vld [vmem:[%s830 + $0x40] sm:$0xff]
    %v840 = vld [vmem:[%s830 + $0x48] sm:$0xff]
    %v841 = vld [vmem:[%s830 + $0x50] sm:$0xff]
    %v842 = vld [vmem:[%s830 + $0x58] sm:$0xff]
    %v843 = vld [vmem:[%s830 + $0x60] sm:$0xff]
    %v844 = vld [vmem:[%s830 + $0x68] sm:$0xff]
    %v845 = vld [vmem:[%s830 + $0x70] sm:$0xff]
    %v846 = vld [vmem:[%s830 + $0x78] sm:$0xff]
    %847 = vmatprep.subr.mxu0 0.0
    %848 = vmatpush1.msra.mxu0 %v831
    %849 = vmatprep.subr.mxu0 0.0
    %850 = vmatpush1.msra.mxu0 %v832
    %851 = vmatprep.subr.mxu0 0.0
    %852 = vmatpush1.msra.mxu0 %v833
    %853 = vmatprep.subr.mxu0 0.0
    %854 = vmatpush1.msra.mxu0 %v834
    %855 = vmatprep.subr.mxu0 0.0
    %856 = vmatpush1.msra.mxu0 %v835
    %857 = vmatprep.subr.mxu0 0.0
    %858 = vmatpush1.msra.mxu0 %v836
    %859 = vmatprep.subr.mxu0 0.0
    %860 = vmatpush1.msra.mxu0 %v837
    %861 = vmatprep.subr.mxu0 0.0
    %862 = vmatpush1.msra.mxu0 %v838
    %863 = vmatprep.subr.mxu0 0.0
    %864 = vmatpush1.msra.mxu0 %v839
    %865 = vmatprep.subr.mxu0 0.0
    %866 = vmatpush1.msra.mxu0 %v840
    %867 = vmatprep.subr.mxu0 0.0
    %868 = vmatpush1.msra.mxu0 %v841
    %869 = vmatprep.subr.mxu0 0.0
    %870 = vmatpush1.msra.mxu0 %v842
    %871 = vmatprep.subr.mxu0 0.0
    %872 = vmatpush1.msra.mxu0 %v843
    %873 = vmatprep.subr.mxu0 0.0
    %874 = vmatpush1.msra.mxu0 %v844
    %875 = vmatprep.subr.mxu0 0.0
    %876 = vmatpush1.msra.mxu0 %v845
    %877 = vmatprep.subr.mxu0 0.0
    %878 = vmatpush1.msra.mxu0 %v846
    %879 = vmatprep.subr.mxu0 0.0
    %880 = vmatpush1.msra.mxu0 0.0
    %881 = vmatprep.subr.mxu0 0.0
    %882 = vmatpush1.msra.mxu0 0.0
    %883 = vmatprep.subr.mxu0 0.0
    %884 = vmatpush1.msra.mxu0 0.0
    %885 = vmatprep.subr.mxu0 0.0
    %886 = vmatpush1.msra.mxu0 0.0
    %887 = vmatprep.subr.mxu0 0.0
    %888 = vmatpush1.msra.mxu0 0.0
    %889 = vmatprep.subr.mxu0 0.0
    %890 = vmatpush1.msra.mxu0 0.0
    %891 = vmatprep.subr.mxu0 0.0
    %892 = vmatpush1.msra.mxu0 0.0
    %893 = vmatprep.subr.mxu0 0.0
    %894 = vmatpush1.msra.mxu0 0.0
    %895 = vmatprep.subr.mxu0 0.0
    %896 = vmatpush1.msra.mxu0 0.0
    %897 = vmatprep.subr.mxu0 0.0
    %898 = vmatpush1.msra.mxu0 0.0
    %899 = vmatprep.subr.mxu0 0.0
    %900 = vmatpush1.msra.mxu0 0.0
    %901 = vmatprep.subr.mxu0 0.0
    %902 = vmatpush1.msra.mxu0 0.0
    %903 = vmatprep.subr.mxu0 0.0
    %904 = vmatpush1.msra.mxu0 0.0
    %905 = vmatprep.subr.mxu0 0.0
    %906 = vmatpush1.msra.mxu0 0.0
    %907 = vmatprep.subr.mxu0 0.0
    %908 = vmatpush1.msra.mxu0 0.0
    %909 = vmatprep.subr.mxu0 0.0
    %910 = vmatpush1.msra.mxu0 0.0
    %911 = vmatprep.mubr.f32.mxu0 0.0
    %912 = vmatmul.mubr.f32.gmra.mrb[0].mxu0 %v826
    %v913 = vpop.f32.mrb[0].mxu0
    %v914 = vadd.f32 0.0, %v913
    %v915 = vpop.f32.mrb[0].mxu0
    %916 = vmatprep.mubr.f32.mxu0 0.0
    %917 = vmatmul.mubr.f32.gmra.mrb[0].mxu0 %v827
    %v918 = vpop.f32.mrb[0].mxu0
    %v919 = vadd.f32 0.0, %v918
    %v920 = vpop.f32.mrb[0].mxu0
    %921 = vmatprep.mubr.f32.mxu0 0.0
    %922 = vmatmul.mubr.f32.gmra.mrb[0].mxu0 %v828
    %v923 = vpop.f32.mrb[0].mxu0
    %v924 = vadd.f32 0.0, %v923
    %v925 = vpop.f32.mrb[0].mxu0
    %926 = vmatprep.mubr.f32.mxu0 0.0
    %927 = vmatmul.mubr.f32.gmra.mrb[0].mxu0 %v829
    %v928 = vpop.f32.mrb[0].mxu0
    %v929 = vadd.f32 0.0, %v928
    %v930 = vpop.f32.mrb[0].mxu0
    %931 = vdwg.mxu0
    %v932 = vadd.f32 %v808, %v914
    %v933 = vadd.f32 %v813, %v919
    %v934 = vadd.f32 %v818, %v924
    %v935 = vadd.f32 %v823, %v929
    %v936 = vld [vmem:[#allocation8] sm:$0xff]
    %v937 = vld [vmem:[#allocation8 + $0x8] sm:$0xff]
    %v938 = vld [vmem:[#allocation8 + $0x10] sm:$0xff]
    %v939 = vld [vmem:[#allocation8 + $0x18] sm:$0xff]
    %v940 = vld [vmem:[#allocation8 + $0x20] sm:$0xff]
    %v941 = vld [vmem:[#allocation8 + $0x28] sm:$0xff]
    %v942 = vld [vmem:[#allocation8 + $0x30] sm:$0xff]
    %v943 = vld [vmem:[#allocation8 + $0x38] sm:$0xff]
    %v944 = vld [vmem:[#allocation8 + $0x40] sm:$0xff]
    %v945 = vld [vmem:[#allocation8 + $0x48] sm:$0xff]
    %v946 = vld [vmem:[#allocation8 + $0x50] sm:$0xff]
    %v947 = vld [vmem:[#allocation8 + $0x58] sm:$0xff]
    %v948 = vld [vmem:[#allocation8 + $0x60] sm:$0xff]
    %v949 = vld [vmem:[#allocation8 + $0x68] sm:$0xff]
    %v950 = vld [vmem:[#allocation8 + $0x70] sm:$0xff]
    %v951 = vld [vmem:[#allocation8 + $0x78] sm:$0xff]
    %v952 = vadd.f32 %v932, %v933
    %v953 = vadd.f32 %v952, %v934
    %v954 = vadd.f32 %v953, %v935
    %v955 = vrot.slane %v954, 4
    %v956 = vadd.f32 %v954, %v955
    %v957 = vrot.slane %v956, 2
    %v958 = vadd.f32 %v956, %v957
    %v959 = vrot.slane %v958, 1
    %v960 = vadd.f32 %v958, %v959
    %v961 = vmul.f32 %v932, %v932
    %v962 = vmul.f32 %v933, %v933
    %v963 = vmul.f32 %v934, %v934
    %v964 = vmul.f32 %v935, %v935
    %v965 = vadd.f32 %v961, %v962
    %v966 = vadd.f32 %v965, %v963
    %v967 = vadd.f32 %v966, %v964
    %v968 = vrot.slane %v967, 4
    %v969 = vadd.f32 %v967, %v968
    %v970 = vrot.slane %v969, 2
    %v971 = vadd.f32 %v969, %v970
    %v972 = vrot.slane %v971, 1
    %v973 = vadd.f32 %v971, %v972
    %974 = vmatprep.subr.mxu0 0.0
    %975 = vmatpush1.msra.mxu0 %v936
    %976 = vmatprep.subr.mxu0 0.0
    %977 = vmatpush1.msra.mxu0 %v937
    %978 = vmatprep.subr.mxu0 0.0
    %979 = vmatpush1.msra.mxu0 %v938
    %980 = vmatprep.subr.mxu0 0.0
    %981 = vmatpush1.msra.mxu0 %v939
    %982 = vmatprep.subr.mxu0 0.0
    %983 = vmatpush1.msra.mxu0 %v940
    %984 = vmatprep.subr.mxu0 0.0
    %985 = vmatpush1.msra.mxu0 %v941
    %986 = vmatprep.subr.mxu0 0.0
    %987 = vmatpush1.msra.mxu0 %v942
    %988 = vmatprep.subr.mxu0 0.0
    %989 = vmatpush1.msra.mxu0 %v943
    %990 = vmatprep.subr.mxu0 0.0
    %991 = vmatpush1.msra.mxu0 %v944
    %992 = vmatprep.subr.mxu0 0.0
    %993 = vmatpush1.msra.mxu0 %v945
    %994 = vmatprep.subr.mxu0 0.0
    %995 = vmatpush1.msra.mxu0 %v946
    %996 = vmatprep.subr.mxu0 0.0
    %997 = vmatpush1.msra.mxu0 %v947
    %998 = vmatprep.subr.mxu0 0.0
    %999 = vmatpush1.msra.mxu0 %v948
    %1000 = vmatprep.subr.mxu0 0.0
    %1001 = vmatpush1.msra.mxu0 %v949
    %1002 = vmatprep.subr.mxu0 0.0
    %1003 = vmatpush1.msra.mxu0 %v950
    %1004 = vmatprep.subr.mxu0 0.0
    %1005 = vmatpush1.msra.mxu0 %v951
    %1006 = vmatprep.subr.mxu0 0.0
    %1007 = vmatpush1.msra.mxu0 0.0
    %1008 = vmatprep.subr.mxu0 0.0
    %1009 = vmatpush1.msra.mxu0 0.0
    %1010 = vmatprep.subr.mxu0 0.0
    %1011 = vmatpush1.msra.mxu0 0.0
    %1012 = vmatprep.subr.mxu0 0.0
    %1013 = vmatpush1.msra.mxu0 0.0
    %1014 = vmatprep.subr.mxu0 0.0
    %1015 = vmatpush1.msra.mxu0 0.0
    %1016 = vmatprep.subr.mxu0 0.0
    %1017 = vmatpush1.msra.mxu0 0.0
    %1018 = vmatprep.subr.mxu0 0.0
    %1019 = vmatpush1.msra.mxu0 0.0
    %1020 = vmatprep.subr.mxu0 0.0
    %1021 = vmatpush1.msra.mxu0 0.0
    %1022 = vmatprep.subr.mxu0 0.0
    %1023 = vmatpush1.msra.mxu0 0.0
    %1024 = vmatprep.subr.mxu0 0.0
    %1025 = vmatpush1.msra.mxu0 0.0
    %1026 = vmatprep.subr.mxu0 0.0
    %1027 = vmatpush1.msra.mxu0 0.0
    %1028 = vmatprep.subr.mxu0 0.0
    %1029 = vmatpush1.msra.mxu0 0.0
    %1030 = vmatprep.subr.mxu0 0.0
    %1031 = vmatpush1.msra.mxu0 0.0
    %1032 = vmatprep.subr.mxu0 0.0
    %1033 = vmatpush1.msra.mxu0 0.0
    %1034 = vmatprep.subr.mxu0 0.0
    %1035 = vmatpush1.msra.mxu0 0.0
    %1036 = vmatprep.subr.mxu0 0.0
    %1037 = vmatpush1.msra.mxu0 0.0
    %1038 = vmatprep.mubr.f32.mxu0 0.0
    %1039 = vmatmul.mubr.f32.gmra.mrb[0].mxu0 %v960
    %v1040 = vpop.f32.mrb[0].mxu0
    %v1041 = vadd.f32 0.0, %v1040
    %v1042 = vpop.f32.mrb[0].mxu0
    %1043 = vdwg.mxu0
    %1044 = vmatprep.subr.mxu0 0.0
    %1045 = vmatpush1.msra.mxu0 %v936
    %1046 = vmatprep.subr.mxu0 0.0
    %1047 = vmatpush1.msra.mxu0 %v937
    %1048 = vmatprep.subr.mxu0 0.0
    %1049 = vmatpush1.msra.mxu0 %v938
    %1050 = vmatprep.subr.mxu0 0.0
    %1051 = vmatpush1.msra.mxu0 %v939
    %1052 = vmatprep.subr.mxu0 0.0
    %1053 = vmatpush1.msra.mxu0 %v940
    %1054 = vmatprep.subr.mxu0 0.0
    %1055 = vmatpush1.msra.mxu0 %v941
    %1056 = vmatprep.subr.mxu0 0.0
    %1057 = vmatpush1.msra.mxu0 %v942
    %1058 = vmatprep.subr.mxu0 0.0
    %1059 = vmatpush1.msra.mxu0 %v943
    %1060 = vmatprep.subr.mxu0 0.0
    %1061 = vmatpush1.msra.mxu0 %v944
    %1062 = vmatprep.subr.mxu0 0.0
    %1063 = vmatpush1.msra.mxu0 %v945
    %1064 = vmatprep.subr.mxu0 0.0
    %1065 = vmatpush1.msra.mxu0 %v946
    %1066 = vmatprep.subr.mxu0 0.0
    %1067 = vmatpush1.msra.mxu0 %v947
    %1068 = vmatprep.subr.mxu0 0.0
    %1069 = vmatpush1.msra.mxu0 %v948
    %1070 = vmatprep.subr.mxu0 0.0
    %1071 = vmatpush1.msra.mxu0 %v949
    %1072 = vmatprep.subr.mxu0 0.0
    %1073 = vmatpush1.msra.mxu0 %v950
    %1074 = vmatprep.subr.mxu0 0.0
    %1075 = vmatpush1.msra.mxu0 %v951
    %1076 = vmatprep.subr.mxu0 0.0
    %1077 = vmatpush1.msra.mxu0 0.0
    %1078 = vmatprep.subr.mxu0 0.0
    %1079 = vmatpush1.msra.mxu0 0.0
    %1080 = vmatprep.subr.mxu0 0.0
    %1081 = vmatpush1.msra.mxu0 0.0
    %1082 = vmatprep.subr.mxu0 0.0
    %1083 = vmatpush1.msra.mxu0 0.0
    %1084 = vmatprep.subr.mxu0 0.0
    %1085 = vmatpush1.msra.mxu0 0.0
    %1086 = vmatprep.subr.mxu0 0.0
    %1087 = vmatpush1.msra.mxu0 0.0
    %1088 = vmatprep.subr.mxu0 0.0
    %1089 = vmatpush1.msra.mxu0 0.0
    %1090 = vmatprep.subr.mxu0 0.0
    %1091 = vmatpush1.msra.mxu0 0.0
    %1092 = vmatprep.subr.mxu0 0.0
    %1093 = vmatpush1.msra.mxu0 0.0
    %1094 = vmatprep.subr.mxu0 0.0
    %1095 = vmatpush1.msra.mxu0 0.0
    %1096 = vmatprep.subr.mxu0 0.0
    %1097 = vmatpush1.msra.mxu0 0.0
    %1098 = vmatprep.subr.mxu0 0.0
    %1099 = vmatpush1.msra.mxu0 0.0
    %1100 = vmatprep.subr.mxu0 0.0
    %1101 = vmatpush1.msra.mxu0 0.0
    %1102 = vmatprep.subr.mxu0 0.0
    %1103 = vmatpush1.msra.mxu0 0.0
    %1104 = vmatprep.subr.mxu0 0.0
    %1105 = vmatpush1.msra.mxu0 0.0
    %1106 = vmatprep.subr.mxu0 0.0
    %1107 = vmatpush1.msra.mxu0 0.0
    %1108 = vmatprep.mubr.f32.mxu0 0.0
    %1109 = vmatmul.mubr.f32.gmra.mrb[0].mxu0 %v973
    %v1110 = vpop.f32.mrb[0].mxu0
    %v1111 = vadd.f32 0.0, %v1110
    %v1112 = vpop.f32.mrb[0].mxu0
    %1113 = vdwg.mxu0
    %v1114 = vmul.f32 %v1041, 0.001953125
    %v1115 = vmul.f32 %v1111, 0.001953125
    %v1116 = vmul.f32 %v1114, %v1114
    %v1117 = vsub.f32 %v1115, %v1116
    %v1118 = vld [vmem:[%s5] sm:$0x1]
    %v1119 = vadd.f32 %v1117, 1e-05
    %v1120 = vrsqrt.pop %v1119
    %v1121 = vmul.f32 %v1118, %v1120
    %v1122 = vld [vmem:[%s6] sm:$0x1]
    %v1123 = vmul.f32 %v1114, %v1121
    %v1124 = vsub.f32 %v1122, %v1123
    %v1126 = vlaneseq
    %v1127 = vshrl.u32 %v1126, 7
    %v1128 = vsub.s32 0, %v1127
    %v1129 = vrot.slane %v1121, %v1128
    %v1131 = vmul.f32 %v932, %v1129
    %v1132 = vmul.f32 %v933, %v1129
    %v1133 = vmul.f32 %v934, %v1129
    %v1134 = vmul.f32 %v935, %v1129
    %v1136 = vlaneseq
    %v1137 = vshrl.u32 %v1136, 7
    %v1138 = vsub.s32 0, %v1137
    %v1139 = vrot.slane %v1124, %v1138
    %v1141 = vadd.f32 %v1131, %v1139
    %v1142 = vadd.f32 %v1132, %v1139
    %v1143 = vadd.f32 %v1133, %v1139
    %v1144 = vadd.f32 %v1134, %v1139
    %v1145 = vld [vmem:[%s0 + $0x1] sm:$0xff]
    %v1146 = vld [vmem:[%s0 + $0x9] sm:$0xff]
    %v1147 = vld [vmem:[%s0 + $0x19] sm:$0xff]
    %v1148 = vld [vmem:[%s0 + $0x21] sm:$0xff]
    %v1149 = vadd.f32 %v1141, %v1145
    %v1150 = vadd.f32 %v1142, %v1146
    %v1151 = vadd.f32 %v1143, %v1147
    %v1152 = vadd.f32 %v1144, %v1148
    %v1153 = vmax.f32 %v1149, 0.0
    %v1154 = vmax.f32 %v1150, 0.0
    %v1155 = vmax.f32 %v1151, 0.0
    %v1156 = vmax.f32 %v1152, 0.0
    %1157 = vst [vmem:[#allocation9] sm:$0xff] %v1153
    %1158 = vst [vmem:[#allocation9 + $0x8] sm:$0xff] %v1154
    %1159 = vst [vmem:[#allocation9 + $0x10] sm:$0xff] %v1155
    %1160 = vst [vmem:[#allocation9 + $0x18] sm:$0xff] %v1156
    // Predicated region
    $region46: #{tpu_custom_call.1} parent=1 // pred_check
      _
    $region47: #{tpu_custom_call.1} parent=1 // pred_check_branch
      %1162 = sbr.rel (0) target = $region49
    $region48: #{tpu_custom_call.1} parent=1 // pred_region
      %s1164 = ssub.s32 512, 512
      %1165 = vsyncadd [#allocation5], %s1164
      %s1166 = sshll.u32 [#allocation9], 4
      %s1167 = int_to_ptr.vmem [resolvable:$true] %s1166
      %1172 = dma.vmem_to_hbm [thread:$0]  %s1167, 512, %s8, [#allocation5], 128, 128, 8
    $region49: #{tpu_custom_call.1} parent=1 // pred_fallthru
      _
    // Predicated region
    $region50: #{tpu_custom_call.1} parent=1 // pred_check
      _
    $region51: #{tpu_custom_call.1} parent=1 // pred_check_branch
      %1174 = sbr.rel (0) target = $region53
    $region52: #{tpu_custom_call.1} parent=1 // pred_region
      %1175 = dma.done [#allocation5], 512
    $region53: #{tpu_custom_call.1} parent=1 // pred_fallthru
      _
    %1176 = vsyncpa [#allocation4], 1
    %1177 = vsyncpa [#allocation7], 1
    %1178 = vsyncpa [#allocation5], 1

</llo_original>
